<compile_context>
chip_gen: v7x
topology: tpu7x:2x2x1
jax: 0.10.0
libtpu: 0.0.40
codegen_flags: <defaults>
</compile_context>

<pallas_src>
import functools
import math

import jax
import jax.numpy as jnp
from jax.experimental import pallas as pl
from jax.experimental.pallas import tpu as pltpu

BN_EPS = 1e-5
LANE = 128


def batch_net_kernel(x_ref, w1_ref, w23_ref, vec_ref, o_ref, *, hp, inv_batch):
    """x_ref:(B,in_dim)  w1_ref:(in_dim,hp)  w23_ref:(2*hp,hp)  vec_ref:(8,hp)  o_ref:(B,hp)."""

    def matmul(a, w):
        # f32 operands, f32 accumulation, full-precision MXU passes (tiny shapes:
        # a single MXU pass either way, so no reason to downcast).
        return jnp.dot(a, w, preferred_element_type=jnp.float32,
                       precision=jax.lax.Precision.HIGHEST)

    def bn_relu(h, g, be):
        # Training-mode BatchNorm1d with biased variance (PyTorch normalization path),
        # folded into a per-feature scale + shift. Centered two-pass stats avoid the
        # E[h^2]-E[h]^2 cancellation issue. rsqrt runs on the EUP slot.
        mu = jnp.sum(h, axis=0, keepdims=True) * inv_batch
        c = h - mu
        var = jnp.sum(c * c, axis=0, keepdims=True) * inv_batch
        scale = g * jax.lax.rsqrt(var + BN_EPS)
        # Padded feature columns: h==0, mu==0, g==0, be==0  =>  output stays 0.
        return jnp.maximum(c * scale + be, 0.0)

    x = x_ref[...]
    w1 = w1_ref[...]
    w2 = w23_ref[0:hp, :]           # static, tile-aligned ref views (no copy)
    w3 = w23_ref[hp:2 * hp, :]
    vecs = vec_ref[...]             # one (8, hp) vreg-slab: all bias/gamma/beta rows
    b1, g1, be1 = vecs[0:1], vecs[1:2], vecs[2:3]
    b2, g2, be2 = vecs[3:4], vecs[4:5], vecs[5:6]
    b3 = vecs[6:7]

    h = bn_relu(matmul(x, w1) + b1, g1, be1)
    h = bn_relu(matmul(h, w2) + b2, g2, be2)
    o_ref[...] = (matmul(h, w3) + b3).astype(o_ref.dtype)


def init_params(key, in_dim, n_hidden_1, n_hidden_2, out_dim):
    """Deterministic init mirroring PyTorch defaults (U(-1/sqrt(fan_in), +)),
    BatchNorm gamma=1, beta=0. Vectors kept 2D [1, F] for TPU layout."""
    def linear_init(k, fan_in, fan_out):
        kw, kb = jax.random.split(k)
        bound = 1.0 / math.sqrt(fan_in)
        w = jax.random.uniform(kw, (fan_in, fan_out), jnp.float32, -bound, bound)
        b = jax.random.uniform(kb, (1, fan_out), jnp.float32, -bound, bound)
        return w, b

    k1, k2, k3 = jax.random.split(key, 3)
    w1, b1 = linear_init(k1, in_dim, n_hidden_1)
    w2, b2 = linear_init(k2, n_hidden_1, n_hidden_2)
    w3, b3 = linear_init(k3, n_hidden_2, out_dim)
    return dict(
        w1=w1, b1=b1,
        g1=jnp.ones((1, n_hidden_1), jnp.float32),
        be1=jnp.zeros((1, n_hidden_1), jnp.float32),
        w2=w2, b2=b2,
        g2=jnp.ones((1, n_hidden_2), jnp.float32),
        be2=jnp.zeros((1, n_hidden_2), jnp.float32),
        w3=w3, b3=b3,
    )


def _pad_cols(a, width):
    return jnp.pad(a, ((0, 0), (0, width - a.shape[1]))) if a.shape[1] != width else a


def _pad_rows(a, height):
    return jnp.pad(a, ((0, height - a.shape[0]), (0, 0))) if a.shape[0] != height else a


def batch_net_forward(x, params, keep_padded=False):
    B, in_dim = x.shape
    n_h1 = params["w1"].shape[1]
    n_h2 = params["w2"].shape[1]
    out_dim = params["w3"].shape[1]
    # One common lane-dense feature width for every hidden / output dim.
    wp = max(pl.cdiv(d, LANE) * LANE for d in (n_h1, n_h2, out_dim))

    # --- pack parameters into 3 lane-dense buffers -------------------------------
    # w1: (in_dim, wp); w23 slab: (2*wp, wp) = [w2 ; w3]; vec slab: (8, wp) =
    # [b1, g1, be1, b2, g2, be2, b3, 0]. All padding is zeros, so padded feature
    # columns are exactly 0 through Linear+BN+ReLU.
    w1 = _pad_cols(params["w1"], wp)
    w2 = _pad_cols(_pad_rows(params["w2"], wp), wp)
    w3 = _pad_cols(_pad_rows(params["w3"], wp), wp)
    w23 = jnp.concatenate([w2, w3], axis=0)

    vec_rows = [params["b1"], params["g1"], params["be1"],
                params["b2"], params["g2"], params["be2"],
                params["b3"], jnp.zeros((1, 1), jnp.float32)]
    vecs = jnp.concatenate([_pad_cols(r, wp) for r in vec_rows], axis=0)

    args = [x, w1, w23, vecs]

    # --- VMEM budget: params + activations/temporaries, capped by chip capacity ---
    param_bytes = sum(a.size * a.dtype.itemsize for a in args)
    act_bytes = 4 * B * wp * 4          # h1, h2, out + temporaries (f32)
    need = param_bytes + act_bytes
    try:
        vmem_cap = pltpu.get_tpu_info().vmem_capacity_bytes   # 64 MiB on v7x, 128 MiB v5e/v6e
    except Exception:                                         # pragma: no cover
        vmem_cap = 64 * 1024 * 1024
    vmem_limit = int(min(vmem_cap - (4 << 20), max(8 << 20, 2 * need)))

    out = pl.pallas_call(
        functools.partial(batch_net_kernel, hp=wp, inv_batch=1.0 / B),
        out_shape=jax.ShapeDtypeStruct((B, wp), jnp.float32),
        in_specs=[pl.BlockSpec(memory_space=pltpu.MemorySpace.VMEM) for _ in args],
        out_specs=pl.BlockSpec(memory_space=pltpu.MemorySpace.VMEM),
        compiler_params=pltpu.CompilerParams(vmem_limit_bytes=vmem_limit),
    )(*args)

    if keep_padded:
        return out          # (B, wp): lane-dense, slice fuses into the consumer
    return out[:, :out_dim]


def batch_net_ref(x, p):
    """Pure-JAX reference of the PyTorch forward (training-mode BN), f32 matmuls."""
    def mm(a, w):
        return jnp.dot(a, w, preferred_element_type=jnp.float32,
                       precision=jax.lax.Precision.HIGHEST)

    def bn_relu(h, g, be):
        mu = jnp.mean(h, axis=0, keepdims=True)
        var = jnp.mean((h - mu) ** 2, axis=0, keepdims=True)
        return jnp.maximum((h - mu) * jax.lax.rsqrt(var + BN_EPS) * g + be, 0.0)

    h = bn_relu(mm(x, p["w1"]) + p["b1"], p["g1"], p["be1"])
    h = bn_relu(mm(h, p["w2"]) + p["b2"], p["g2"], p["be2"])
    return mm(h, p["w3"]) + p["b3"]


if __name__ == "__main__":
    in_dim, n_hidden_1, n_hidden_2, out_dim = 32, 64, 32, 16
    batch = 8   # NOTE: training-mode BatchNorm1d needs batch >= 2 (PyTorch raises on 1)

    key = jax.random.PRNGKey(0)
    kx, kp = jax.random.split(key)
    x = jax.random.normal(kx, (batch, in_dim), dtype=jnp.float32)
    params = init_params(kp, in_dim, n_hidden_1, n_hidden_2, out_dim)

    out = jax.block_until_ready(batch_net_forward(x, params))
    assert out.shape == (batch, out_dim)
    assert bool(jnp.all(jnp.isfinite(out)))

    # Tight check vs. the f32 PyTorch-equivalent forward (no bf16 casts anymore,
    # so the kernel is directly comparable).
    ref = batch_net_ref(x, params)
    assert jnp.allclose(out, ref, atol=1e-3, rtol=1e-3), float(
        jnp.max(jnp.abs(out - ref)))

    # Padded-output path: extra lanes must be exactly zero.
    out_pad = jax.block_until_ready(batch_net_forward(x, params, keep_padded=True))
    assert out_pad.shape == (batch, 128)
    assert bool(jnp.all(out_pad[:, out_dim:] == 0.0))
    assert jnp.allclose(out_pad[:, :out_dim], ref, atol=1e-3, rtol=1e-3)

    print("KERNEL_OK")
</pallas_src>

<mosaic_0001>
module attributes {stable_mosaic.version = 11 : i64} {
  func.func @batch_net_kernel(%arg0: memref<8x32xf32, #tpu.memory_space<vmem>>, %arg1: memref<32x128xf32, #tpu.memory_space<vmem>>, %arg2: memref<256x128xf32, #tpu.memory_space<vmem>>, %arg3: memref<8x128xf32, #tpu.memory_space<vmem>>, %arg4: memref<8x128xf32, #tpu.memory_space<vmem>>) attributes {dimension_semantics = [], scalar_prefetch = 0 : i64, scratch_operands = 0 : i64, tpu.core_type = #tpu.core_type<tc>} {
    %c0 = arith.constant 0 : index
    %c0_0 = arith.constant 0 : index
    %0 = vector.load %arg0[%c0, %c0_0] : memref<8x32xf32, #tpu.memory_space<vmem>>, vector<8x32xf32>
    %c0_1 = arith.constant 0 : index
    %c0_2 = arith.constant 0 : index
    %1 = vector.load %arg1[%c0_1, %c0_2] : memref<32x128xf32, #tpu.memory_space<vmem>>, vector<32x128xf32>
    %c0_3 = arith.constant 0 : index
    %c0_4 = arith.constant 0 : index
    %2 = vector.load %arg2[%c0_3, %c0_4] : memref<256x128xf32, #tpu.memory_space<vmem>>, vector<128x128xf32>
    %c128 = arith.constant 128 : index
    %c0_5 = arith.constant 0 : index
    %3 = vector.load %arg2[%c128, %c0_5] : memref<256x128xf32, #tpu.memory_space<vmem>>, vector<128x128xf32>
    %c0_6 = arith.constant 0 : index
    %c0_7 = arith.constant 0 : index
    %4 = vector.load %arg3[%c0_6, %c0_7] : memref<8x128xf32, #tpu.memory_space<vmem>>, vector<8x128xf32>
    %5 = vector.extract_strided_slice %4 {offsets = [0, 0], sizes = [1, 128], strides = [1, 1]} : vector<8x128xf32> to vector<1x128xf32>
    %6 = vector.extract_strided_slice %4 {offsets = [1, 0], sizes = [1, 128], strides = [1, 1]} : vector<8x128xf32> to vector<1x128xf32>
    %7 = vector.extract_strided_slice %4 {offsets = [2, 0], sizes = [1, 128], strides = [1, 1]} : vector<8x128xf32> to vector<1x128xf32>
    %8 = vector.extract_strided_slice %4 {offsets = [3, 0], sizes = [1, 128], strides = [1, 1]} : vector<8x128xf32> to vector<1x128xf32>
    %9 = vector.extract_strided_slice %4 {offsets = [4, 0], sizes = [1, 128], strides = [1, 1]} : vector<8x128xf32> to vector<1x128xf32>
    %10 = vector.extract_strided_slice %4 {offsets = [5, 0], sizes = [1, 128], strides = [1, 1]} : vector<8x128xf32> to vector<1x128xf32>
    %11 = vector.extract_strided_slice %4 {offsets = [6, 0], sizes = [1, 128], strides = [1, 1]} : vector<8x128xf32> to vector<1x128xf32>
    %cst = arith.constant dense<0.000000e+00> : vector<8x128xf32>
    %12 = tpu.matmul %0, %1, %cst {dimension_numbers = #tpu.dot_dimension_numbers<[1], [0], [0], [1], [0, 0, 1, 1], [], []>, precision = #tpu.contract_precision<fp32>} : vector<8x32xf32>, vector<32x128xf32>, vector<8x128xf32> -> vector<8x128xf32>
    %13 = vector.broadcast %5 : vector<1x128xf32> to vector<8x128xf32>
    %14 = arith.addf %12, %13 : vector<8x128xf32>
    %cst_8 = arith.constant dense<0.000000e+00> : vector<128xf32>
    %15 = vector.multi_reduction <add>, %14, %cst_8 [0] : vector<8x128xf32> to vector<128xf32>
    %16 = vector.shape_cast %15 : vector<128xf32> to vector<1x128xf32>
    %cst_9 = arith.constant 1.250000e-01 : f32
    %17 = vector.broadcast %cst_9 : f32 to vector<1x128xf32>
    %18 = arith.mulf %16, %17 : vector<1x128xf32>
    %19 = vector.broadcast %18 : vector<1x128xf32> to vector<8x128xf32>
    %20 = arith.subf %14, %19 : vector<8x128xf32>
    %21 = arith.mulf %20, %20 : vector<8x128xf32>
    %cst_10 = arith.constant dense<0.000000e+00> : vector<128xf32>
    %22 = vector.multi_reduction <add>, %21, %cst_10 [0] : vector<8x128xf32> to vector<128xf32>
    %23 = vector.shape_cast %22 : vector<128xf32> to vector<1x128xf32>
    %cst_11 = arith.constant 1.250000e-01 : f32
    %24 = vector.broadcast %cst_11 : f32 to vector<1x128xf32>
    %25 = arith.mulf %23, %24 : vector<1x128xf32>
    %cst_12 = arith.constant 9.99999974E-6 : f32
    %26 = vector.broadcast %cst_12 : f32 to vector<1x128xf32>
    %27 = arith.addf %25, %26 : vector<1x128xf32>
    %28 = math.rsqrt %27 : vector<1x128xf32>
    %29 = arith.mulf %6, %28 : vector<1x128xf32>
    %30 = vector.broadcast %29 : vector<1x128xf32> to vector<8x128xf32>
    %31 = arith.mulf %20, %30 : vector<8x128xf32>
    %32 = vector.broadcast %7 : vector<1x128xf32> to vector<8x128xf32>
    %33 = arith.addf %31, %32 : vector<8x128xf32>
    %cst_13 = arith.constant 0.000000e+00 : f32
    %34 = vector.broadcast %cst_13 : f32 to vector<8x128xf32>
    %35 = arith.maximumf %33, %34 : vector<8x128xf32>
    %cst_14 = arith.constant dense<0.000000e+00> : vector<8x128xf32>
    %36 = tpu.matmul %35, %2, %cst_14 {dimension_numbers = #tpu.dot_dimension_numbers<[1], [0], [0], [1], [0, 0, 1, 1], [], []>, precision = #tpu.contract_precision<fp32>} : vector<8x128xf32>, vector<128x128xf32>, vector<8x128xf32> -> vector<8x128xf32>
    %37 = vector.broadcast %8 : vector<1x128xf32> to vector<8x128xf32>
    %38 = arith.addf %36, %37 : vector<8x128xf32>
    %cst_15 = arith.constant dense<0.000000e+00> : vector<128xf32>
    %39 = vector.multi_reduction <add>, %38, %cst_15 [0] : vector<8x128xf32> to vector<128xf32>
    %40 = vector.shape_cast %39 : vector<128xf32> to vector<1x128xf32>
    %cst_16 = arith.constant 1.250000e-01 : f32
    %41 = vector.broadcast %cst_16 : f32 to vector<1x128xf32>
    %42 = arith.mulf %40, %41 : vector<1x128xf32>
    %43 = vector.broadcast %42 : vector<1x128xf32> to vector<8x128xf32>
    %44 = arith.subf %38, %43 : vector<8x128xf32>
    %45 = arith.mulf %44, %44 : vector<8x128xf32>
    %cst_17 = arith.constant dense<0.000000e+00> : vector<128xf32>
    %46 = vector.multi_reduction <add>, %45, %cst_17 [0] : vector<8x128xf32> to vector<128xf32>
    %47 = vector.shape_cast %46 : vector<128xf32> to vector<1x128xf32>
    %cst_18 = arith.constant 1.250000e-01 : f32
    %48 = vector.broadcast %cst_18 : f32 to vector<1x128xf32>
    %49 = arith.mulf %47, %48 : vector<1x128xf32>
    %cst_19 = arith.constant 9.99999974E-6 : f32
    %50 = vector.broadcast %cst_19 : f32 to vector<1x128xf32>
    %51 = arith.addf %49, %50 : vector<1x128xf32>
    %52 = math.rsqrt %51 : vector<1x128xf32>
    %53 = arith.mulf %9, %52 : vector<1x128xf32>
    %54 = vector.broadcast %53 : vector<1x128xf32> to vector<8x128xf32>
    %55 = arith.mulf %44, %54 : vector<8x128xf32>
    %56 = vector.broadcast %10 : vector<1x128xf32> to vector<8x128xf32>
    %57 = arith.addf %55, %56 : vector<8x128xf32>
    %cst_20 = arith.constant 0.000000e+00 : f32
    %58 = vector.broadcast %cst_20 : f32 to vector<8x128xf32>
    %59 = arith.maximumf %57, %58 : vector<8x128xf32>
    %cst_21 = arith.constant dense<0.000000e+00> : vector<8x128xf32>
    %60 = tpu.matmul %59, %3, %cst_21 {dimension_numbers = #tpu.dot_dimension_numbers<[1], [0], [0], [1], [0, 0, 1, 1], [], []>, precision = #tpu.contract_precision<fp32>} : vector<8x128xf32>, vector<128x128xf32>, vector<8x128xf32> -> vector<8x128xf32>
    %61 = vector.broadcast %11 : vector<1x128xf32> to vector<8x128xf32>
    %62 = arith.addf %60, %61 : vector<8x128xf32>
    %c0_22 = arith.constant 0 : index
    %c0_23 = arith.constant 0 : index
    %63 = vector.load %arg4[%c0_22, %c0_23] : memref<8x128xf32, #tpu.memory_space<vmem>>, vector<8x128xf32>
    tpu.vector_store %arg4[%c0_22, %c0_23], %62 {strides = array<i32>} : memref<8x128xf32, #tpu.memory_space<vmem>>, vector<8x128xf32>,
    return
  }
}

</mosaic_0001>

<llo_original>
// kernel: tpu_custom_call.1
$region0: #{tpu_custom_call.1}
  #allocation0 [shape = 'u32[]', space=smem, size = 0x4, offset = 0x4, fixed_abs, tag = 'smem constant byte address 0x4 - core index']
  #allocation1 [shape = 'u32[144,128]{1,0:T(1,128)}', space=vmem, size = 0x12000, scoped, tag = 'internal scratch']
  %s0 = inlined_call_operand.hbm [shape: f32[8,32], index: 0, kind: input, shape index: {}]
  %s1 = inlined_call_operand.hbm [shape: f32[32,128], index: 1, kind: input, shape index: {}]
  %s2 = inlined_call_operand.hbm [shape: f32[256,128], index: 2, kind: input, shape index: {}]
  %s3 = inlined_call_operand.vmem [shape: f32[8,128], index: 3, kind: input, shape index: {}]
  %s4 = inlined_call_operand.hbm [shape: f32[8,128], index: 4, kind: output, shape index: {}]
  %s5 = sld [smem:[#allocation0]]
  $region38: #{tpu_custom_call.1} parent=0
    _
  %s7 = ssub.s32 1, %s5
  %s8 = scalar_select 0, %s7, %s5
  $region1: #{tpu_custom_call.1} parent=0
    #allocation2 [shape = 'u8[4096]{0}', space=vmem, size = 0x1000, scoped, tag = 'input window, operand 0, single buffered']
    #allocation3 [shape = 's32[1]{0}', space=sflag, size = 0x4, scoped, tag = 'scoped memory for tpu_custom_call.1']
    #allocation4 [shape = 's32[1]{0}', space=sflag, size = 0x4, scoped, tag = 'scoped memory for tpu_custom_call.1']
    #allocation5 [shape = 'u8[16384]{0}', space=vmem, size = 0x4000, scoped, tag = 'input window, operand 1, single buffered']
    #allocation6 [shape = 's32[1]{0}', space=sflag, size = 0x4, scoped, tag = 'scoped memory for tpu_custom_call.1']
    #allocation7 [shape = 'u8[131072]{0}', space=vmem, size = 0x20000, scoped, tag = 'input window, operand 2, single buffered']
    #allocation8 [shape = 'u8[4096]{0}', space=vmem, size = 0x1000, scoped, tag = 'output window, operand 0, single buffered']
    %9 = vsyncpa [#allocation3], 0
    %10 = vsyncpa [#allocation6], 0
    %11 = vsyncpa [#allocation4], 0
    // Predicated region
    $region2: #{tpu_custom_call.1} parent=1 // pred_check
      _
    $region3: #{tpu_custom_call.1} parent=1 // pred_check_branch
      %13 = sbr.rel (0) target = $region5
    $region4: #{tpu_custom_call.1} parent=1 // pred_region
      %s15 = ssub.s32 128, 128
      %16 = vsyncadd [#allocation3], %s15
      %s18 = sshll.u32 [#allocation2], 4
      %s19 = int_to_ptr.vmem [resolvable:$true] %s18
      %21 = dma.hbm_to_vmem [thread:$0]  %s0, 128, %s19, [#allocation3]
    $region5: #{tpu_custom_call.1} parent=1 // pred_fallthru
      _
    // Predicated region
    $region6: #{tpu_custom_call.1} parent=1 // pred_check
      _
    $region7: #{tpu_custom_call.1} parent=1 // pred_check_branch
      %23 = sbr.rel (0) target = $region9
    $region8: #{tpu_custom_call.1} parent=1 // pred_region
      %s25 = ssub.s32 512, 512
      %26 = vsyncadd [#allocation6], %s25
      %s27 = sshll.u32 [#allocation5], 4
      %s28 = int_to_ptr.vmem [resolvable:$true] %s27
      %33 = dma.hbm_to_vmem [thread:$0]  %s1, 512, %s28, [#allocation6], 128, 128, 8
    $region9: #{tpu_custom_call.1} parent=1 // pred_fallthru
      _
    // Predicated region
    $region10: #{tpu_custom_call.1} parent=1 // pred_check
      _
    $region11: #{tpu_custom_call.1} parent=1 // pred_check_branch
      %35 = sbr.rel (0) target = $region13
    $region12: #{tpu_custom_call.1} parent=1 // pred_region
      %s37 = ssub.s32 4096, 4096
      %38 = vsyncadd [#allocation6], %s37
      %s39 = sshll.u32 [#allocation7], 4
      %s40 = int_to_ptr.vmem [resolvable:$true] %s39
      %45 = dma.hbm_to_vmem [thread:$0]  %s2, 4096, %s40, [#allocation6], 128, 128, 8
    $region13: #{tpu_custom_call.1} parent=1 // pred_fallthru
      _
    // Predicated region
    $region14: #{tpu_custom_call.1} parent=1 // pred_check
      _
    $region15: #{tpu_custom_call.1} parent=1 // pred_check_branch
      %47 = sbr.rel (0) target = $region17
    $region16: #{tpu_custom_call.1} parent=1 // pred_region
      _
    $region17: #{tpu_custom_call.1} parent=1 // pred_fallthru
      _
    // Predicated region
    $region18: #{tpu_custom_call.1} parent=1 // pred_check
      _
    $region19: #{tpu_custom_call.1} parent=1 // pred_check_branch
      %49 = sbr.rel (0) target = $region21
    $region20: #{tpu_custom_call.1} parent=1 // pred_region
      %50 = dma.done [#allocation3], 128
    $region21: #{tpu_custom_call.1} parent=1 // pred_fallthru
      _
    // Predicated region
    $region22: #{tpu_custom_call.1} parent=1 // pred_check
      _
    $region23: #{tpu_custom_call.1} parent=1 // pred_check_branch
      %52 = sbr.rel (0) target = $region25
    $region24: #{tpu_custom_call.1} parent=1 // pred_region
      %53 = dma.done [#allocation6], 512
    $region25: #{tpu_custom_call.1} parent=1 // pred_fallthru
      _
    // Predicated region
    $region26: #{tpu_custom_call.1} parent=1 // pred_check
      _
    $region27: #{tpu_custom_call.1} parent=1 // pred_check_branch
      %55 = sbr.rel (0) target = $region29
    $region28: #{tpu_custom_call.1} parent=1 // pred_region
      %56 = dma.done [#allocation6], 4096
    $region29: #{tpu_custom_call.1} parent=1 // pred_fallthru
      _
    %v57 = vld [vmem:[#allocation2] sm:$0xff]
    %v58 = vld [vmem:[#allocation5] sm:$0xff]
    %v59 = vld [vmem:[#allocation5 + $0x8] sm:$0xff]
    %v60 = vld [vmem:[#allocation5 + $0x10] sm:$0xff]
    %v61 = vld [vmem:[#allocation5 + $0x18] sm:$0xff]
    %v62 = vld [vmem:[#allocation7] sm:$0xff]
    %v63 = vld [vmem:[#allocation7 + $0x8] sm:$0xff]
    %v64 = vld [vmem:[#allocation7 + $0x10] sm:$0xff]
    %v65 = vld [vmem:[#allocation7 + $0x18] sm:$0xff]
    %v66 = vld [vmem:[#allocation7 + $0x20] sm:$0xff]
    %v67 = vld [vmem:[#allocation7 + $0x28] sm:$0xff]
    %v68 = vld [vmem:[#allocation7 + $0x30] sm:$0xff]
    %v69 = vld [vmem:[#allocation7 + $0x38] sm:$0xff]
    %v70 = vld [vmem:[#allocation7 + $0x40] sm:$0xff]
    %v71 = vld [vmem:[#allocation7 + $0x48] sm:$0xff]
    %v72 = vld [vmem:[#allocation7 + $0x50] sm:$0xff]
    %v73 = vld [vmem:[#allocation7 + $0x58] sm:$0xff]
    %v74 = vld [vmem:[#allocation7 + $0x60] sm:$0xff]
    %v75 = vld [vmem:[#allocation7 + $0x68] sm:$0xff]
    %v76 = vld [vmem:[#allocation7 + $0x70] sm:$0xff]
    %v77 = vld [vmem:[#allocation7 + $0x78] sm:$0xff]
    %v78 = vld [vmem:[#allocation7 + $0x80] sm:$0xff]
    %v79 = vld [vmem:[#allocation7 + $0x88] sm:$0xff]
    %v80 = vld [vmem:[#allocation7 + $0x90] sm:$0xff]
    %v81 = vld [vmem:[#allocation7 + $0x98] sm:$0xff]
    %v82 = vld [vmem:[#allocation7 + $0xa0] sm:$0xff]
    %v83 = vld [vmem:[#allocation7 + $0xa8] sm:$0xff]
    %v84 = vld [vmem:[#allocation7 + $0xb0] sm:$0xff]
    %v85 = vld [vmem:[#allocation7 + $0xb8] sm:$0xff]
    %v86 = vld [vmem:[#allocation7 + $0xc0] sm:$0xff]
    %v87 = vld [vmem:[#allocation7 + $0xc8] sm:$0xff]
    %v88 = vld [vmem:[#allocation7 + $0xd0] sm:$0xff]
    %v89 = vld [vmem:[#allocation7 + $0xd8] sm:$0xff]
    %v90 = vld [vmem:[#allocation7 + $0xe0] sm:$0xff]
    %v91 = vld [vmem:[#allocation7 + $0xe8] sm:$0xff]
    %v92 = vld [vmem:[#allocation7 + $0xf0] sm:$0xff]
    %v93 = vld [vmem:[#allocation7 + $0xf8] sm:$0xff]
    %v94 = vld [vmem:[%s3] sm:$0xff]
    %v95 = vlaneseq
    %v96 = vshrl.u32 %v95, 7
    %v97 = vsub.s32 0, %v96
    %v98 = vrot.slane %v94, %v97
    %vm99 = vcmask 261120
    %v101 = vsel %vm99, %v57, 0
    %103 = vmatprep.subr.mxu0 0.0
    %v104 = vand.u32 %v58, 4294901760
    %105 = vmatpush1.msra.mxu0 %v104
    %106 = vmatprep.subr.mxu0 0.0
    %v107 = vand.u32 %v59, 4294901760
    %108 = vmatpush1.msra.mxu0 %v107
    %109 = vmatprep.subr.mxu0 0.0
    %v110 = vand.u32 %v60, 4294901760
    %111 = vmatpush1.msra.mxu0 %v110
    %112 = vmatprep.subr.mxu0 0.0
    %v113 = vand.u32 %v61, 4294901760
    %114 = vmatpush1.msra.mxu0 %v113
    %115 = vmatprep.subr.mxu0 0.0
    %116 = vmatpush1.msra.mxu0 0.0
    %117 = vmatprep.subr.mxu0 0.0
    %118 = vmatpush1.msra.mxu0 0.0
    %119 = vmatprep.subr.mxu0 0.0
    %120 = vmatpush1.msra.mxu0 0.0
    %121 = vmatprep.subr.mxu0 0.0
    %122 = vmatpush1.msra.mxu0 0.0
    %123 = vmatprep.subr.mxu0 0.0
    %124 = vmatpush1.msra.mxu0 0.0
    %125 = vmatprep.subr.mxu0 0.0
    %126 = vmatpush1.msra.mxu0 0.0
    %127 = vmatprep.subr.mxu0 0.0
    %128 = vmatpush1.msra.mxu0 0.0
    %129 = vmatprep.subr.mxu0 0.0
    %130 = vmatpush1.msra.mxu0 0.0
    %131 = vmatprep.subr.mxu0 0.0
    %132 = vmatpush1.msra.mxu0 0.0
    %133 = vmatprep.subr.mxu0 0.0
    %134 = vmatpush1.msra.mxu0 0.0
    %135 = vmatprep.subr.mxu0 0.0
    %136 = vmatpush1.msra.mxu0 0.0
    %137 = vmatprep.subr.mxu0 0.0
    %138 = vmatpush1.msra.mxu0 0.0
    %139 = vmatprep.subr.mxu0 0.0
    %140 = vmatpush1.msra.mxu0 0.0
    %141 = vmatprep.subr.mxu0 0.0
    %142 = vmatpush1.msra.mxu0 0.0
    %143 = vmatprep.subr.mxu0 0.0
    %144 = vmatpush1.msra.mxu0 0.0
    %145 = vmatprep.subr.mxu0 0.0
    %146 = vmatpush1.msra.mxu0 0.0
    %147 = vmatprep.subr.mxu0 0.0
    %148 = vmatpush1.msra.mxu0 0.0
    %149 = vmatprep.subr.mxu0 0.0
    %150 = vmatpush1.msra.mxu0 0.0
    %151 = vmatprep.subr.mxu0 0.0
    %152 = vmatpush1.msra.mxu0 0.0
    %153 = vmatprep.subr.mxu0 0.0
    %154 = vmatpush1.msra.mxu0 0.0
    %155 = vmatprep.subr.mxu0 0.0
    %156 = vmatpush1.msra.mxu0 0.0
    %157 = vmatprep.subr.mxu0 0.0
    %158 = vmatpush1.msra.mxu0 0.0
    %159 = vmatprep.subr.mxu0 0.0
    %160 = vmatpush1.msra.mxu0 0.0
    %161 = vmatprep.subr.mxu0 0.0
    %162 = vmatpush1.msra.mxu0 0.0
    %163 = vmatprep.subr.mxu0 0.0
    %164 = vmatpush1.msra.mxu0 0.0
    %165 = vmatprep.subr.mxu0 0.0
    %166 = vmatpush1.msra.mxu0 0.0
    %167 = vmatprep.subr.mxu0 0.0
    %168 = vmatpush1.msra.mxu0 0.0
    %169 = vmatprep.subr.mxu0 0.0
    %170 = vmatpush1.msra.mxu0 0.0
    %171 = vmatprep.mubr.f32.mxu0 0.0
    %v172 = vand.u32 %v101, 4294901760
    %v173 = vsub.f32 %v101, %v172
    %v174 = vand.u32 %v173, 4294901760
    %v175 = vsub.f32 %v173, %v174
    %v176 = vand.u32 %v175, 4294901760
    %177 = vmatmul.mubr.f32.gmra.mrb[0].mxu0 %v176
    %v178 = vpop.f32.mrb[0].mxu0
    %v179 = vadd.f32 %v98, %v178
    %v180 = vpop.f32.mrb[0].mxu0
    %181 = vdwg.mxu0
    %182 = vmatprep.subr.mxu0 0.0
    %v183 = vand.u32 %v58, 4294901760
    %v184 = vsub.f32 %v58, %v183
    %v185 = vand.u32 %v184, 4294901760
    %v186 = vsub.f32 %v184, %v185
    %v187 = vand.u32 %v186, 4294901760
    %188 = vmatpush1.msra.mxu0 %v187
    %189 = vmatprep.subr.mxu0 0.0
    %v190 = vand.u32 %v59, 4294901760
    %v191 = vsub.f32 %v59, %v190
    %v192 = vand.u32 %v191, 4294901760
    %v193 = vsub.f32 %v191, %v192
    %v194 = vand.u32 %v193, 4294901760
    %195 = vmatpush1.msra.mxu0 %v194
    %196 = vmatprep.subr.mxu0 0.0
    %v197 = vand.u32 %v60, 4294901760
    %v198 = vsub.f32 %v60, %v197
    %v199 = vand.u32 %v198, 4294901760
    %v200 = vsub.f32 %v198, %v199
    %v201 = vand.u32 %v200, 4294901760
    %202 = vmatpush1.msra.mxu0 %v201
    %203 = vmatprep.subr.mxu0 0.0
    %v204 = vand.u32 %v61, 4294901760
    %v205 = vsub.f32 %v61, %v204
    %v206 = vand.u32 %v205, 4294901760
    %v207 = vsub.f32 %v205, %v206
    %v208 = vand.u32 %v207, 4294901760
    %209 = vmatpush1.msra.mxu0 %v208
    %210 = vmatprep.subr.mxu0 0.0
    %211 = vmatpush1.msra.mxu0 0.0
    %212 = vmatprep.subr.mxu0 0.0
    %213 = vmatpush1.msra.mxu0 0.0
    %214 = vmatprep.subr.mxu0 0.0
    %215 = vmatpush1.msra.mxu0 0.0
    %216 = vmatprep.subr.mxu0 0.0
    %217 = vmatpush1.msra.mxu0 0.0
    %218 = vmatprep.subr.mxu0 0.0
    %219 = vmatpush1.msra.mxu0 0.0
    %220 = vmatprep.subr.mxu0 0.0
    %221 = vmatpush1.msra.mxu0 0.0
    %222 = vmatprep.subr.mxu0 0.0
    %223 = vmatpush1.msra.mxu0 0.0
    %224 = vmatprep.subr.mxu0 0.0
    %225 = vmatpush1.msra.mxu0 0.0
    %226 = vmatprep.subr.mxu0 0.0
    %227 = vmatpush1.msra.mxu0 0.0
    %228 = vmatprep.subr.mxu0 0.0
    %229 = vmatpush1.msra.mxu0 0.0
    %230 = vmatprep.subr.mxu0 0.0
    %231 = vmatpush1.msra.mxu0 0.0
    %232 = vmatprep.subr.mxu0 0.0
    %233 = vmatpush1.msra.mxu0 0.0
    %234 = vmatprep.subr.mxu0 0.0
    %235 = vmatpush1.msra.mxu0 0.0
    %236 = vmatprep.subr.mxu0 0.0
    %237 = vmatpush1.msra.mxu0 0.0
    %238 = vmatprep.subr.mxu0 0.0
    %239 = vmatpush1.msra.mxu0 0.0
    %240 = vmatprep.subr.mxu0 0.0
    %241 = vmatpush1.msra.mxu0 0.0
    %242 = vmatprep.subr.mxu0 0.0
    %243 = vmatpush1.msra.mxu0 0.0
    %244 = vmatprep.subr.mxu0 0.0
    %245 = vmatpush1.msra.mxu0 0.0
    %246 = vmatprep.subr.mxu0 0.0
    %247 = vmatpush1.msra.mxu0 0.0
    %248 = vmatprep.subr.mxu0 0.0
    %249 = vmatpush1.msra.mxu0 0.0
    %250 = vmatprep.subr.mxu0 0.0
    %251 = vmatpush1.msra.mxu0 0.0
    %252 = vmatprep.subr.mxu0 0.0
    %253 = vmatpush1.msra.mxu0 0.0
    %254 = vmatprep.subr.mxu0 0.0
    %255 = vmatpush1.msra.mxu0 0.0
    %256 = vmatprep.subr.mxu0 0.0
    %257 = vmatpush1.msra.mxu0 0.0
    %258 = vmatprep.subr.mxu0 0.0
    %259 = vmatpush1.msra.mxu0 0.0
    %260 = vmatprep.subr.mxu0 0.0
    %261 = vmatpush1.msra.mxu0 0.0
    %262 = vmatprep.subr.mxu0 0.0
    %263 = vmatpush1.msra.mxu0 0.0
    %264 = vmatprep.subr.mxu0 0.0
    %265 = vmatpush1.msra.mxu0 0.0
    %266 = vmatprep.mubr.f32.mxu0 0.0
    %v267 = vand.u32 %v101, 4294901760
    %268 = vmatmul.mubr.f32.gmra.mrb[0].mxu0 %v267
    %v269 = vpop.f32.mrb[0].mxu0
    %v270 = vadd.f32 %v179, %v269
    %v271 = vpop.f32.mrb[0].mxu0
    %272 = vdwg.mxu0
    %273 = vmatprep.subr.mxu0 0.0
    %v274 = vand.u32 %v58, 4294901760
    %v275 = vsub.f32 %v58, %v274
    %276 = vmatpush1.msra.mxu0 %v275
    %277 = vmatprep.subr.mxu0 0.0
    %v278 = vand.u32 %v59, 4294901760
    %v279 = vsub.f32 %v59, %v278
    %280 = vmatpush1.msra.mxu0 %v279
    %281 = vmatprep.subr.mxu0 0.0
    %v282 = vand.u32 %v60, 4294901760
    %v283 = vsub.f32 %v60, %v282
    %284 = vmatpush1.msra.mxu0 %v283
    %285 = vmatprep.subr.mxu0 0.0
    %v286 = vand.u32 %v61, 4294901760
    %v287 = vsub.f32 %v61, %v286
    %288 = vmatpush1.msra.mxu0 %v287
    %289 = vmatprep.subr.mxu0 0.0
    %290 = vmatpush1.msra.mxu0 0.0
    %291 = vmatprep.subr.mxu0 0.0
    %292 = vmatpush1.msra.mxu0 0.0
    %293 = vmatprep.subr.mxu0 0.0
    %294 = vmatpush1.msra.mxu0 0.0
    %295 = vmatprep.subr.mxu0 0.0
    %296 = vmatpush1.msra.mxu0 0.0
    %297 = vmatprep.subr.mxu0 0.0
    %298 = vmatpush1.msra.mxu0 0.0
    %299 = vmatprep.subr.mxu0 0.0
    %300 = vmatpush1.msra.mxu0 0.0
    %301 = vmatprep.subr.mxu0 0.0
    %302 = vmatpush1.msra.mxu0 0.0
    %303 = vmatprep.subr.mxu0 0.0
    %304 = vmatpush1.msra.mxu0 0.0
    %305 = vmatprep.subr.mxu0 0.0
    %306 = vmatpush1.msra.mxu0 0.0
    %307 = vmatprep.subr.mxu0 0.0
    %308 = vmatpush1.msra.mxu0 0.0
    %309 = vmatprep.subr.mxu0 0.0
    %310 = vmatpush1.msra.mxu0 0.0
    %311 = vmatprep.subr.mxu0 0.0
    %312 = vmatpush1.msra.mxu0 0.0
    %313 = vmatprep.subr.mxu0 0.0
    %314 = vmatpush1.msra.mxu0 0.0
    %315 = vmatprep.subr.mxu0 0.0
    %316 = vmatpush1.msra.mxu0 0.0
    %317 = vmatprep.subr.mxu0 0.0
    %318 = vmatpush1.msra.mxu0 0.0
    %319 = vmatprep.subr.mxu0 0.0
    %320 = vmatpush1.msra.mxu0 0.0
    %321 = vmatprep.subr.mxu0 0.0
    %322 = vmatpush1.msra.mxu0 0.0
    %323 = vmatprep.subr.mxu0 0.0
    %324 = vmatpush1.msra.mxu0 0.0
    %325 = vmatprep.subr.mxu0 0.0
    %326 = vmatpush1.msra.mxu0 0.0
    %327 = vmatprep.subr.mxu0 0.0
    %328 = vmatpush1.msra.mxu0 0.0
    %329 = vmatprep.subr.mxu0 0.0
    %330 = vmatpush1.msra.mxu0 0.0
    %331 = vmatprep.subr.mxu0 0.0
    %332 = vmatpush1.msra.mxu0 0.0
    %333 = vmatprep.subr.mxu0 0.0
    %334 = vmatpush1.msra.mxu0 0.0
    %335 = vmatprep.subr.mxu0 0.0
    %336 = vmatpush1.msra.mxu0 0.0
    %337 = vmatprep.subr.mxu0 0.0
    %338 = vmatpush1.msra.mxu0 0.0
    %339 = vmatprep.subr.mxu0 0.0
    %340 = vmatpush1.msra.mxu0 0.0
    %341 = vmatprep.subr.mxu0 0.0
    %342 = vmatpush1.msra.mxu0 0.0
    %343 = vmatprep.subr.mxu0 0.0
    %344 = vmatpush1.msra.mxu0 0.0
    %345 = vmatprep.mubr.f32.mxu0 0.0
    %v346 = vand.u32 %v101, 4294901760
    %v347 = vsub.f32 %v101, %v346
    %348 = vmatmul.mubr.f32.gmra.mrb[0].mxu0 %v347
    %v349 = vpop.f32.mrb[0].mxu0
    %v350 = vadd.f32 %v270, %v349
    %v351 = vpop.f32.mrb[0].mxu0
    %352 = vdwg.mxu0
    %353 = vmatprep.subr.mxu0 0.0
    %v354 = vand.u32 %v58, 4294901760
    %355 = vmatpush1.msra.mxu0 %v354
    %356 = vmatprep.subr.mxu0 0.0
    %v357 = vand.u32 %v59, 4294901760
    %358 = vmatpush1.msra.mxu0 %v357
    %359 = vmatprep.subr.mxu0 0.0
    %v360 = vand.u32 %v60, 4294901760
    %361 = vmatpush1.msra.mxu0 %v360
    %362 = vmatprep.subr.mxu0 0.0
    %v363 = vand.u32 %v61, 4294901760
    %364 = vmatpush1.msra.mxu0 %v363
    %365 = vmatprep.subr.mxu0 0.0
    %366 = vmatpush1.msra.mxu0 0.0
    %367 = vmatprep.subr.mxu0 0.0
    %368 = vmatpush1.msra.mxu0 0.0
    %369 = vmatprep.subr.mxu0 0.0
    %370 = vmatpush1.msra.mxu0 0.0
    %371 = vmatprep.subr.mxu0 0.0
    %372 = vmatpush1.msra.mxu0 0.0
    %373 = vmatprep.subr.mxu0 0.0
    %374 = vmatpush1.msra.mxu0 0.0
    %375 = vmatprep.subr.mxu0 0.0
    %376 = vmatpush1.msra.mxu0 0.0
    %377 = vmatprep.subr.mxu0 0.0
    %378 = vmatpush1.msra.mxu0 0.0
    %379 = vmatprep.subr.mxu0 0.0
    %380 = vmatpush1.msra.mxu0 0.0
    %381 = vmatprep.subr.mxu0 0.0
    %382 = vmatpush1.msra.mxu0 0.0
    %383 = vmatprep.subr.mxu0 0.0
    %384 = vmatpush1.msra.mxu0 0.0
    %385 = vmatprep.subr.mxu0 0.0
    %386 = vmatpush1.msra.mxu0 0.0
    %387 = vmatprep.subr.mxu0 0.0
    %388 = vmatpush1.msra.mxu0 0.0
    %389 = vmatprep.subr.mxu0 0.0
    %390 = vmatpush1.msra.mxu0 0.0
    %391 = vmatprep.subr.mxu0 0.0
    %392 = vmatpush1.msra.mxu0 0.0
    %393 = vmatprep.subr.mxu0 0.0
    %394 = vmatpush1.msra.mxu0 0.0
    %395 = vmatprep.subr.mxu0 0.0
    %396 = vmatpush1.msra.mxu0 0.0
    %397 = vmatprep.subr.mxu0 0.0
    %398 = vmatpush1.msra.mxu0 0.0
    %399 = vmatprep.subr.mxu0 0.0
    %400 = vmatpush1.msra.mxu0 0.0
    %401 = vmatprep.subr.mxu0 0.0
    %402 = vmatpush1.msra.mxu0 0.0
    %403 = vmatprep.subr.mxu0 0.0
    %404 = vmatpush1.msra.mxu0 0.0
    %405 = vmatprep.subr.mxu0 0.0
    %406 = vmatpush1.msra.mxu0 0.0
    %407 = vmatprep.subr.mxu0 0.0
    %408 = vmatpush1.msra.mxu0 0.0
    %409 = vmatprep.subr.mxu0 0.0
    %410 = vmatpush1.msra.mxu0 0.0
    %411 = vmatprep.subr.mxu0 0.0
    %412 = vmatpush1.msra.mxu0 0.0
    %413 = vmatprep.subr.mxu0 0.0
    %414 = vmatpush1.msra.mxu0 0.0
    %415 = vmatprep.subr.mxu0 0.0
    %416 = vmatpush1.msra.mxu0 0.0
    %417 = vmatprep.subr.mxu0 0.0
    %418 = vmatpush1.msra.mxu0 0.0
    %419 = vmatprep.subr.mxu0 0.0
    %420 = vmatpush1.msra.mxu0 0.0
    %421 = vmatprep.mubr.f32.mxu0 0.0
    %v422 = vand.u32 %v101, 4294901760
    %v423 = vsub.f32 %v101, %v422
    %v424 = vand.u32 %v423, 4294901760
    %425 = vmatmul.mubr.f32.gmra.mrb[0].mxu0 %v424
    %v426 = vpop.f32.mrb[0].mxu0
    %v427 = vadd.f32 %v350, %v426
    %v428 = vpop.f32.mrb[0].mxu0
    %429 = vdwg.mxu0
    %430 = vmatprep.subr.mxu0 0.0
    %v431 = vand.u32 %v58, 4294901760
    %v432 = vsub.f32 %v58, %v431
    %v433 = vand.u32 %v432, 4294901760
    %434 = vmatpush1.msra.mxu0 %v433
    %435 = vmatprep.subr.mxu0 0.0
    %v436 = vand.u32 %v59, 4294901760
    %v437 = vsub.f32 %v59, %v436
    %v438 = vand.u32 %v437, 4294901760
    %439 = vmatpush1.msra.mxu0 %v438
    %440 = vmatprep.subr.mxu0 0.0
    %v441 = vand.u32 %v60, 4294901760
    %v442 = vsub.f32 %v60, %v441
    %v443 = vand.u32 %v442, 4294901760
    %444 = vmatpush1.msra.mxu0 %v443
    %445 = vmatprep.subr.mxu0 0.0
    %v446 = vand.u32 %v61, 4294901760
    %v447 = vsub.f32 %v61, %v446
    %v448 = vand.u32 %v447, 4294901760
    %449 = vmatpush1.msra.mxu0 %v448
    %450 = vmatprep.subr.mxu0 0.0
    %451 = vmatpush1.msra.mxu0 0.0
    %452 = vmatprep.subr.mxu0 0.0
    %453 = vmatpush1.msra.mxu0 0.0
    %454 = vmatprep.subr.mxu0 0.0
    %455 = vmatpush1.msra.mxu0 0.0
    %456 = vmatprep.subr.mxu0 0.0
    %457 = vmatpush1.msra.mxu0 0.0
    %458 = vmatprep.subr.mxu0 0.0
    %459 = vmatpush1.msra.mxu0 0.0
    %460 = vmatprep.subr.mxu0 0.0
    %461 = vmatpush1.msra.mxu0 0.0
    %462 = vmatprep.subr.mxu0 0.0
    %463 = vmatpush1.msra.mxu0 0.0
    %464 = vmatprep.subr.mxu0 0.0
    %465 = vmatpush1.msra.mxu0 0.0
    %466 = vmatprep.subr.mxu0 0.0
    %467 = vmatpush1.msra.mxu0 0.0
    %468 = vmatprep.subr.mxu0 0.0
    %469 = vmatpush1.msra.mxu0 0.0
    %470 = vmatprep.subr.mxu0 0.0
    %471 = vmatpush1.msra.mxu0 0.0
    %472 = vmatprep.subr.mxu0 0.0
    %473 = vmatpush1.msra.mxu0 0.0
    %474 = vmatprep.subr.mxu0 0.0
    %475 = vmatpush1.msra.mxu0 0.0
    %476 = vmatprep.subr.mxu0 0.0
    %477 = vmatpush1.msra.mxu0 0.0
    %478 = vmatprep.subr.mxu0 0.0
    %479 = vmatpush1.msra.mxu0 0.0
    %480 = vmatprep.subr.mxu0 0.0
    %481 = vmatpush1.msra.mxu0 0.0
    %482 = vmatprep.subr.mxu0 0.0
    %483 = vmatpush1.msra.mxu0 0.0
    %484 = vmatprep.subr.mxu0 0.0
    %485 = vmatpush1.msra.mxu0 0.0
    %486 = vmatprep.subr.mxu0 0.0
    %487 = vmatpush1.msra.mxu0 0.0
    %488 = vmatprep.subr.mxu0 0.0
    %489 = vmatpush1.msra.mxu0 0.0
    %490 = vmatprep.subr.mxu0 0.0
    %491 = vmatpush1.msra.mxu0 0.0
    %492 = vmatprep.subr.mxu0 0.0
    %493 = vmatpush1.msra.mxu0 0.0
    %494 = vmatprep.subr.mxu0 0.0
    %495 = vmatpush1.msra.mxu0 0.0
    %496 = vmatprep.subr.mxu0 0.0
    %497 = vmatpush1.msra.mxu0 0.0
    %498 = vmatprep.subr.mxu0 0.0
    %499 = vmatpush1.msra.mxu0 0.0
    %500 = vmatprep.subr.mxu0 0.0
    %501 = vmatpush1.msra.mxu0 0.0
    %502 = vmatprep.subr.mxu0 0.0
    %503 = vmatpush1.msra.mxu0 0.0
    %504 = vmatprep.subr.mxu0 0.0
    %505 = vmatpush1.msra.mxu0 0.0
    %506 = vmatprep.mubr.f32.mxu0 0.0
    %v507 = vand.u32 %v101, 4294901760
    %508 = vmatmul.mubr.f32.gmra.mrb[0].mxu0 %v507
    %v509 = vpop.f32.mrb[0].mxu0
    %v510 = vadd.f32 %v427, %v509
    %v511 = vpop.f32.mrb[0].mxu0
    %512 = vdwg.mxu0
    %513 = vmatprep.subr.mxu0 0.0
    %v514 = vand.u32 %v58, 4294901760
    %515 = vmatpush1.msra.mxu0 %v514
    %516 = vmatprep.subr.mxu0 0.0
    %v517 = vand.u32 %v59, 4294901760
    %518 = vmatpush1.msra.mxu0 %v517
    %519 = vmatprep.subr.mxu0 0.0
    %v520 = vand.u32 %v60, 4294901760
    %521 = vmatpush1.msra.mxu0 %v520
    %522 = vmatprep.subr.mxu0 0.0
    %v523 = vand.u32 %v61, 4294901760
    %524 = vmatpush1.msra.mxu0 %v523
    %525 = vmatprep.subr.mxu0 0.0
    %526 = vmatpush1.msra.mxu0 0.0
    %527 = vmatprep.subr.mxu0 0.0
    %528 = vmatpush1.msra.mxu0 0.0
    %529 = vmatprep.subr.mxu0 0.0
    %530 = vmatpush1.msra.mxu0 0.0
    %531 = vmatprep.subr.mxu0 0.0
    %532 = vmatpush1.msra.mxu0 0.0
    %533 = vmatprep.subr.mxu0 0.0
    %534 = vmatpush1.msra.mxu0 0.0
    %535 = vmatprep.subr.mxu0 0.0
    %536 = vmatpush1.msra.mxu0 0.0
    %537 = vmatprep.subr.mxu0 0.0
    %538 = vmatpush1.msra.mxu0 0.0
    %539 = vmatprep.subr.mxu0 0.0
    %540 = vmatpush1.msra.mxu0 0.0
    %541 = vmatprep.subr.mxu0 0.0
    %542 = vmatpush1.msra.mxu0 0.0
    %543 = vmatprep.subr.mxu0 0.0
    %544 = vmatpush1.msra.mxu0 0.0
    %545 = vmatprep.subr.mxu0 0.0
    %546 = vmatpush1.msra.mxu0 0.0
    %547 = vmatprep.subr.mxu0 0.0
    %548 = vmatpush1.msra.mxu0 0.0
    %549 = vmatprep.subr.mxu0 0.0
    %550 = vmatpush1.msra.mxu0 0.0
    %551 = vmatprep.subr.mxu0 0.0
    %552 = vmatpush1.msra.mxu0 0.0
    %553 = vmatprep.subr.mxu0 0.0
    %554 = vmatpush1.msra.mxu0 0.0
    %555 = vmatprep.subr.mxu0 0.0
    %556 = vmatpush1.msra.mxu0 0.0
    %557 = vmatprep.subr.mxu0 0.0
    %558 = vmatpush1.msra.mxu0 0.0
    %559 = vmatprep.subr.mxu0 0.0
    %560 = vmatpush1.msra.mxu0 0.0
    %561 = vmatprep.subr.mxu0 0.0
    %562 = vmatpush1.msra.mxu0 0.0
    %563 = vmatprep.subr.mxu0 0.0
    %564 = vmatpush1.msra.mxu0 0.0
    %565 = vmatprep.subr.mxu0 0.0
    %566 = vmatpush1.msra.mxu0 0.0
    %567 = vmatprep.subr.mxu0 0.0
    %568 = vmatpush1.msra.mxu0 0.0
    %569 = vmatprep.subr.mxu0 0.0
    %570 = vmatpush1.msra.mxu0 0.0
    %571 = vmatprep.subr.mxu0 0.0
    %572 = vmatpush1.msra.mxu0 0.0
    %573 = vmatprep.subr.mxu0 0.0
    %574 = vmatpush1.msra.mxu0 0.0
    %575 = vmatprep.subr.mxu0 0.0
    %576 = vmatpush1.msra.mxu0 0.0
    %577 = vmatprep.subr.mxu0 0.0
    %578 = vmatpush1.msra.mxu0 0.0
    %579 = vmatprep.subr.mxu0 0.0
    %580 = vmatpush1.msra.mxu0 0.0
    %581 = vmatprep.mubr.f32.mxu0 0.0
    %v582 = vand.u32 %v101, 4294901760
    %583 = vmatmul.mubr.f32.gmra.mrb[0].mxu0 %v582
    %v584 = vpop.f32.mrb[0].mxu0
    %v585 = vadd.f32 %v510, %v584
    %v586 = vpop.f32.mrb[0].mxu0
    %587 = vdwg.mxu0
    %v588 = vrot.slane %v585, 4
    %v589 = vadd.f32 %v585, %v588
    %v590 = vrot.slane %v589, 2
    %v591 = vadd.f32 %v589, %v590
    %v592 = vrot.slane %v591, 1
    %v593 = vadd.f32 %v591, %v592
    %v594 = vmul.f32 %v593, 0.125
    %v595 = vsub.f32 %v585, %v594
    %v596 = vmul.f32 %v595, %v595
    %v597 = vrot.slane %v596, 4
    %v598 = vadd.f32 %v596, %v597
    %v599 = vrot.slane %v598, 2
    %v600 = vadd.f32 %v598, %v599
    %v601 = vrot.slane %v600, 1
    %v602 = vadd.f32 %v600, %v601
    %v603 = vmul.f32 %v602, 0.125
    %v604 = vadd.f32 %v603, 1e-05
    %v605 = vrsqrt.pop %v604
    %v606 = vmul.f32 %v94, %v605
    %v607 = vlaneseq
    %v608 = vshrl.u32 %v607, 7
    %v609 = vsub.s32 1, %v608
    %v610 = vrot.slane %v606, %v609
    %v611 = vmul.f32 %v595, %v610
    %v612 = vlaneseq
    %v613 = vshrl.u32 %v612, 7
    %v614 = vsub.s32 2, %v613
    %v615 = vrot.slane %v94, %v614
    %v616 = vadd.f32 %v611, %v615
    %v617 = vmax.f32 %v616, 0.0
    %v618 = vlaneseq
    %v619 = vshrl.u32 %v618, 7
    %v620 = vsub.s32 3, %v619
    %v621 = vrot.slane %v94, %v620
    %622 = vmatprep.subr.mxu0 0.0
    %v623 = vand.u32 %v62, 4294901760
    %624 = vmatpush1.msra.mxu0 %v623
    %625 = vmatprep.subr.mxu0 0.0
    %v626 = vand.u32 %v63, 4294901760
    %627 = vmatpush1.msra.mxu0 %v626
    %628 = vmatprep.subr.mxu0 0.0
    %v629 = vand.u32 %v64, 4294901760
    %630 = vmatpush1.msra.mxu0 %v629
    %631 = vmatprep.subr.mxu0 0.0
    %v632 = vand.u32 %v65, 4294901760
    %633 = vmatpush1.msra.mxu0 %v632
    %634 = vmatprep.subr.mxu0 0.0
    %v635 = vand.u32 %v66, 4294901760
    %636 = vmatpush1.msra.mxu0 %v635
    %637 = vmatprep.subr.mxu0 0.0
    %v638 = vand.u32 %v67, 4294901760
    %639 = vmatpush1.msra.mxu0 %v638
    %640 = vmatprep.subr.mxu0 0.0
    %v641 = vand.u32 %v68, 4294901760
    %642 = vmatpush1.msra.mxu0 %v641
    %643 = vmatprep.subr.mxu0 0.0
    %v644 = vand.u32 %v69, 4294901760
    %645 = vmatpush1.msra.mxu0 %v644
    %646 = vmatprep.subr.mxu0 0.0
    %v647 = vand.u32 %v70, 4294901760
    %648 = vmatpush1.msra.mxu0 %v647
    %649 = vmatprep.subr.mxu0 0.0
    %v650 = vand.u32 %v71, 4294901760
    %651 = vmatpush1.msra.mxu0 %v650
    %652 = vmatprep.subr.mxu0 0.0
    %v653 = vand.u32 %v72, 4294901760
    %654 = vmatpush1.msra.mxu0 %v653
    %655 = vmatprep.subr.mxu0 0.0
    %v656 = vand.u32 %v73, 4294901760
    %657 = vmatpush1.msra.mxu0 %v656
    %658 = vmatprep.subr.mxu0 0.0
    %v659 = vand.u32 %v74, 4294901760
    %660 = vmatpush1.msra.mxu0 %v659
    %661 = vmatprep.subr.mxu0 0.0
    %v662 = vand.u32 %v75, 4294901760
    %663 = vmatpush1.msra.mxu0 %v662
    %664 = vmatprep.subr.mxu0 0.0
    %v665 = vand.u32 %v76, 4294901760
    %666 = vmatpush1.msra.mxu0 %v665
    %667 = vmatprep.subr.mxu0 0.0
    %v668 = vand.u32 %v77, 4294901760
    %669 = vmatpush1.msra.mxu0 %v668
    %670 = vmatprep.subr.mxu0 0.0
    %671 = vmatpush1.msra.mxu0 0.0
    %672 = vmatprep.subr.mxu0 0.0
    %673 = vmatpush1.msra.mxu0 0.0
    %674 = vmatprep.subr.mxu0 0.0
    %675 = vmatpush1.msra.mxu0 0.0
    %676 = vmatprep.subr.mxu0 0.0
    %677 = vmatpush1.msra.mxu0 0.0
    %678 = vmatprep.subr.mxu0 0.0
    %679 = vmatpush1.msra.mxu0 0.0
    %680 = vmatprep.subr.mxu0 0.0
    %681 = vmatpush1.msra.mxu0 0.0
    %682 = vmatprep.subr.mxu0 0.0
    %683 = vmatpush1.msra.mxu0 0.0
    %684 = vmatprep.subr.mxu0 0.0
    %685 = vmatpush1.msra.mxu0 0.0
    %686 = vmatprep.subr.mxu0 0.0
    %687 = vmatpush1.msra.mxu0 0.0
    %688 = vmatprep.subr.mxu0 0.0
    %689 = vmatpush1.msra.mxu0 0.0
    %690 = vmatprep.subr.mxu0 0.0
    %691 = vmatpush1.msra.mxu0 0.0
    %692 = vmatprep.subr.mxu0 0.0
    %693 = vmatpush1.msra.mxu0 0.0
    %694 = vmatprep.subr.mxu0 0.0
    %695 = vmatpush1.msra.mxu0 0.0
    %696 = vmatprep.subr.mxu0 0.0
    %697 = vmatpush1.msra.mxu0 0.0
    %698 = vmatprep.subr.mxu0 0.0
    %699 = vmatpush1.msra.mxu0 0.0
    %700 = vmatprep.subr.mxu0 0.0
    %701 = vmatpush1.msra.mxu0 0.0
    %702 = vmatprep.mubr.f32.mxu0 0.0
    %v703 = vand.u32 %v617, 4294901760
    %v704 = vsub.f32 %v617, %v703
    %v705 = vand.u32 %v704, 4294901760
    %v706 = vsub.f32 %v704, %v705
    %v707 = vand.u32 %v706, 4294901760
    %708 = vmatmul.mubr.f32.gmra.mrb[0].mxu0 %v707
    %v709 = vpop.f32.mrb[0].mxu0
    %v710 = vadd.f32 %v621, %v709
    %v711 = vpop.f32.mrb[0].mxu0
    %712 = vdwg.mxu0
    %713 = vmatprep.subr.mxu0 0.0
    %v714 = vand.u32 %v62, 4294901760
    %v715 = vsub.f32 %v62, %v714
    %v716 = vand.u32 %v715, 4294901760
    %v717 = vsub.f32 %v715, %v716
    %v718 = vand.u32 %v717, 4294901760
    %719 = vmatpush1.msra.mxu0 %v718
    %720 = vmatprep.subr.mxu0 0.0
    %v721 = vand.u32 %v63, 4294901760
    %v722 = vsub.f32 %v63, %v721
    %v723 = vand.u32 %v722, 4294901760
    %v724 = vsub.f32 %v722, %v723
    %v725 = vand.u32 %v724, 4294901760
    %726 = vmatpush1.msra.mxu0 %v725
    %727 = vmatprep.subr.mxu0 0.0
    %v728 = vand.u32 %v64, 4294901760
    %v729 = vsub.f32 %v64, %v728
    %v730 = vand.u32 %v729, 4294901760
    %v731 = vsub.f32 %v729, %v730
    %v732 = vand.u32 %v731, 4294901760
    %733 = vmatpush1.msra.mxu0 %v732
    %734 = vmatprep.subr.mxu0 0.0
    %v735 = vand.u32 %v65, 4294901760
    %v736 = vsub.f32 %v65, %v735
    %v737 = vand.u32 %v736, 4294901760
    %v738 = vsub.f32 %v736, %v737
    %v739 = vand.u32 %v738, 4294901760
    %740 = vmatpush1.msra.mxu0 %v739
    %741 = vmatprep.subr.mxu0 0.0
    %v742 = vand.u32 %v66, 4294901760
    %v743 = vsub.f32 %v66, %v742
    %v744 = vand.u32 %v743, 4294901760
    %v745 = vsub.f32 %v743, %v744
    %v746 = vand.u32 %v745, 4294901760
    %747 = vmatpush1.msra.mxu0 %v746
    %748 = vmatprep.subr.mxu0 0.0
    %v749 = vand.u32 %v67, 4294901760
    %v750 = vsub.f32 %v67, %v749
    %v751 = vand.u32 %v750, 4294901760
    %v752 = vsub.f32 %v750, %v751
    %v753 = vand.u32 %v752, 4294901760
    %754 = vmatpush1.msra.mxu0 %v753
    %755 = vmatprep.subr.mxu0 0.0
    %v756 = vand.u32 %v68, 4294901760
    %v757 = vsub.f32 %v68, %v756
    %v758 = vand.u32 %v757, 4294901760
    %v759 = vsub.f32 %v757, %v758
    %v760 = vand.u32 %v759, 4294901760
    %761 = vmatpush1.msra.mxu0 %v760
    %762 = vmatprep.subr.mxu0 0.0
    %v763 = vand.u32 %v69, 4294901760
    %v764 = vsub.f32 %v69, %v763
    %v765 = vand.u32 %v764, 4294901760
    %v766 = vsub.f32 %v764, %v765
    %v767 = vand.u32 %v766, 4294901760
    %768 = vmatpush1.msra.mxu0 %v767
    %769 = vmatprep.subr.mxu0 0.0
    %v770 = vand.u32 %v70, 4294901760
    %v771 = vsub.f32 %v70, %v770
    %v772 = vand.u32 %v771, 4294901760
    %v773 = vsub.f32 %v771, %v772
    %v774 = vand.u32 %v773, 4294901760
    %775 = vmatpush1.msra.mxu0 %v774
    %776 = vmatprep.subr.mxu0 0.0
    %v777 = vand.u32 %v71, 4294901760
    %v778 = vsub.f32 %v71, %v777
    %v779 = vand.u32 %v778, 4294901760
    %v780 = vsub.f32 %v778, %v779
    %v781 = vand.u32 %v780, 4294901760
    %782 = vmatpush1.msra.mxu0 %v781
    %783 = vmatprep.subr.mxu0 0.0
    %v784 = vand.u32 %v72, 4294901760
    %v785 = vsub.f32 %v72, %v784
    %v786 = vand.u32 %v785, 4294901760
    %v787 = vsub.f32 %v785, %v786
    %v788 = vand.u32 %v787, 4294901760
    %789 = vmatpush1.msra.mxu0 %v788
    %790 = vmatprep.subr.mxu0 0.0
    %v791 = vand.u32 %v73, 4294901760
    %v792 = vsub.f32 %v73, %v791
    %v793 = vand.u32 %v792, 4294901760
    %v794 = vsub.f32 %v792, %v793
    %v795 = vand.u32 %v794, 4294901760
    %796 = vmatpush1.msra.mxu0 %v795
    %797 = vmatprep.subr.mxu0 0.0
    %v798 = vand.u32 %v74, 4294901760
    %v799 = vsub.f32 %v74, %v798
    %v800 = vand.u32 %v799, 4294901760
    %v801 = vsub.f32 %v799, %v800
    %v802 = vand.u32 %v801, 4294901760
    %803 = vmatpush1.msra.mxu0 %v802
    %804 = vmatprep.subr.mxu0 0.0
    %v805 = vand.u32 %v75, 4294901760
    %v806 = vsub.f32 %v75, %v805
    %v807 = vand.u32 %v806, 4294901760
    %v808 = vsub.f32 %v806, %v807
    %v809 = vand.u32 %v808, 4294901760
    %810 = vmatpush1.msra.mxu0 %v809
    %811 = vmatprep.subr.mxu0 0.0
    %v812 = vand.u32 %v76, 4294901760
    %v813 = vsub.f32 %v76, %v812
    %v814 = vand.u32 %v813, 4294901760
    %v815 = vsub.f32 %v813, %v814
    %v816 = vand.u32 %v815, 4294901760
    %817 = vmatpush1.msra.mxu0 %v816
    %818 = vmatprep.subr.mxu0 0.0
    %v819 = vand.u32 %v77, 4294901760
    %v820 = vsub.f32 %v77, %v819
    %v821 = vand.u32 %v820, 4294901760
    %v822 = vsub.f32 %v820, %v821
    %v823 = vand.u32 %v822, 4294901760
    %824 = vmatpush1.msra.mxu0 %v823
    %825 = vmatprep.subr.mxu0 0.0
    %826 = vmatpush1.msra.mxu0 0.0
    %827 = vmatprep.subr.mxu0 0.0
    %828 = vmatpush1.msra.mxu0 0.0
    %829 = vmatprep.subr.mxu0 0.0
    %830 = vmatpush1.msra.mxu0 0.0
    %831 = vmatprep.subr.mxu0 0.0
    %832 = vmatpush1.msra.mxu0 0.0
    %833 = vmatprep.subr.mxu0 0.0
    %834 = vmatpush1.msra.mxu0 0.0
    %835 = vmatprep.subr.mxu0 0.0
    %836 = vmatpush1.msra.mxu0 0.0
    %837 = vmatprep.subr.mxu0 0.0
    %838 = vmatpush1.msra.mxu0 0.0
    %839 = vmatprep.subr.mxu0 0.0
    %840 = vmatpush1.msra.mxu0 0.0
    %841 = vmatprep.subr.mxu0 0.0
    %842 = vmatpush1.msra.mxu0 0.0
    %843 = vmatprep.subr.mxu0 0.0
    %844 = vmatpush1.msra.mxu0 0.0
    %845 = vmatprep.subr.mxu0 0.0
    %846 = vmatpush1.msra.mxu0 0.0
    %847 = vmatprep.subr.mxu0 0.0
    %848 = vmatpush1.msra.mxu0 0.0
    %849 = vmatprep.subr.mxu0 0.0
    %850 = vmatpush1.msra.mxu0 0.0
    %851 = vmatprep.subr.mxu0 0.0
    %852 = vmatpush1.msra.mxu0 0.0
    %853 = vmatprep.subr.mxu0 0.0
    %854 = vmatpush1.msra.mxu0 0.0
    %855 = vmatprep.subr.mxu0 0.0
    %856 = vmatpush1.msra.mxu0 0.0
    %857 = vmatprep.mubr.f32.mxu0 0.0
    %v858 = vand.u32 %v617, 4294901760
    %859 = vmatmul.mubr.f32.gmra.mrb[0].mxu0 %v858
    %v860 = vpop.f32.mrb[0].mxu0
    %v861 = vadd.f32 %v710, %v860
    %v862 = vpop.f32.mrb[0].mxu0
    %863 = vdwg.mxu0
    %864 = vmatprep.subr.mxu0 0.0
    %v865 = vand.u32 %v62, 4294901760
    %v866 = vsub.f32 %v62, %v865
    %867 = vmatpush1.msra.mxu0 %v866
    %868 = vmatprep.subr.mxu0 0.0
    %v869 = vand.u32 %v63, 4294901760
    %v870 = vsub.f32 %v63, %v869
    %871 = vmatpush1.msra.mxu0 %v870
    %872 = vmatprep.subr.mxu0 0.0
    %v873 = vand.u32 %v64, 4294901760
    %v874 = vsub.f32 %v64, %v873
    %875 = vmatpush1.msra.mxu0 %v874
    %876 = vmatprep.subr.mxu0 0.0
    %v877 = vand.u32 %v65, 4294901760
    %v878 = vsub.f32 %v65, %v877
    %879 = vmatpush1.msra.mxu0 %v878
    %880 = vmatprep.subr.mxu0 0.0
    %v881 = vand.u32 %v66, 4294901760
    %v882 = vsub.f32 %v66, %v881
    %883 = vmatpush1.msra.mxu0 %v882
    %884 = vmatprep.subr.mxu0 0.0
    %v885 = vand.u32 %v67, 4294901760
    %v886 = vsub.f32 %v67, %v885
    %887 = vmatpush1.msra.mxu0 %v886
    %888 = vmatprep.subr.mxu0 0.0
    %v889 = vand.u32 %v68, 4294901760
    %v890 = vsub.f32 %v68, %v889
    %891 = vmatpush1.msra.mxu0 %v890
    %892 = vmatprep.subr.mxu0 0.0
    %v893 = vand.u32 %v69, 4294901760
    %v894 = vsub.f32 %v69, %v893
    %895 = vmatpush1.msra.mxu0 %v894
    %896 = vmatprep.subr.mxu0 0.0
    %v897 = vand.u32 %v70, 4294901760
    %v898 = vsub.f32 %v70, %v897
    %899 = vmatpush1.msra.mxu0 %v898
    %900 = vmatprep.subr.mxu0 0.0
    %v901 = vand.u32 %v71, 4294901760
    %v902 = vsub.f32 %v71, %v901
    %903 = vmatpush1.msra.mxu0 %v902
    %904 = vmatprep.subr.mxu0 0.0
    %v905 = vand.u32 %v72, 4294901760
    %v906 = vsub.f32 %v72, %v905
    %907 = vmatpush1.msra.mxu0 %v906
    %908 = vmatprep.subr.mxu0 0.0
    %v909 = vand.u32 %v73, 4294901760
    %v910 = vsub.f32 %v73, %v909
    %911 = vmatpush1.msra.mxu0 %v910
    %912 = vmatprep.subr.mxu0 0.0
    %v913 = vand.u32 %v74, 4294901760
    %v914 = vsub.f32 %v74, %v913
    %915 = vmatpush1.msra.mxu0 %v914
    %916 = vmatprep.subr.mxu0 0.0
    %v917 = vand.u32 %v75, 4294901760
    %v918 = vsub.f32 %v75, %v917
    %919 = vmatpush1.msra.mxu0 %v918
    %920 = vmatprep.subr.mxu0 0.0
    %v921 = vand.u32 %v76, 4294901760
    %v922 = vsub.f32 %v76, %v921
    %923 = vmatpush1.msra.mxu0 %v922
    %924 = vmatprep.subr.mxu0 0.0
    %v925 = vand.u32 %v77, 4294901760
    %v926 = vsub.f32 %v77, %v925
    %927 = vmatpush1.msra.mxu0 %v926
    %928 = vmatprep.subr.mxu0 0.0
    %929 = vmatpush1.msra.mxu0 0.0
    %930 = vmatprep.subr.mxu0 0.0
    %931 = vmatpush1.msra.mxu0 0.0
    %932 = vmatprep.subr.mxu0 0.0
    %933 = vmatpush1.msra.mxu0 0.0
    %934 = vmatprep.subr.mxu0 0.0
    %935 = vmatpush1.msra.mxu0 0.0
    %936 = vmatprep.subr.mxu0 0.0
    %937 = vmatpush1.msra.mxu0 0.0
    %938 = vmatprep.subr.mxu0 0.0
    %939 = vmatpush1.msra.mxu0 0.0
    %940 = vmatprep.subr.mxu0 0.0
    %941 = vmatpush1.msra.mxu0 0.0
    %942 = vmatprep.subr.mxu0 0.0
    %943 = vmatpush1.msra.mxu0 0.0
    %944 = vmatprep.subr.mxu0 0.0
    %945 = vmatpush1.msra.mxu0 0.0
    %946 = vmatprep.subr.mxu0 0.0
    %947 = vmatpush1.msra.mxu0 0.0
    %948 = vmatprep.subr.mxu0 0.0
    %949 = vmatpush1.msra.mxu0 0.0
    %950 = vmatprep.subr.mxu0 0.0
    %951 = vmatpush1.msra.mxu0 0.0
    %952 = vmatprep.subr.mxu0 0.0
    %953 = vmatpush1.msra.mxu0 0.0
    %954 = vmatprep.subr.mxu0 0.0
    %955 = vmatpush1.msra.mxu0 0.0
    %956 = vmatprep.subr.mxu0 0.0
    %957 = vmatpush1.msra.mxu0 0.0
    %958 = vmatprep.subr.mxu0 0.0
    %959 = vmatpush1.msra.mxu0 0.0
    %960 = vmatprep.mubr.f32.mxu0 0.0
    %v961 = vand.u32 %v617, 4294901760
    %v962 = vsub.f32 %v617, %v961
    %963 = vmatmul.mubr.f32.gmra.mrb[0].mxu0 %v962
    %v964 = vpop.f32.mrb[0].mxu0
    %v965 = vadd.f32 %v861, %v964
    %v966 = vpop.f32.mrb[0].mxu0
    %967 = vdwg.mxu0
    %968 = vmatprep.subr.mxu0 0.0
    %v969 = vand.u32 %v62, 4294901760
    %970 = vmatpush1.msra.mxu0 %v969
    %971 = vmatprep.subr.mxu0 0.0
    %v972 = vand.u32 %v63, 4294901760
    %973 = vmatpush1.msra.mxu0 %v972
    %974 = vmatprep.subr.mxu0 0.0
    %v975 = vand.u32 %v64, 4294901760
    %976 = vmatpush1.msra.mxu0 %v975
    %977 = vmatprep.subr.mxu0 0.0
    %v978 = vand.u32 %v65, 4294901760
    %979 = vmatpush1.msra.mxu0 %v978
    %980 = vmatprep.subr.mxu0 0.0
    %v981 = vand.u32 %v66, 4294901760
    %982 = vmatpush1.msra.mxu0 %v981
    %983 = vmatprep.subr.mxu0 0.0
    %v984 = vand.u32 %v67, 4294901760
    %985 = vmatpush1.msra.mxu0 %v984
    %986 = vmatprep.subr.mxu0 0.0
    %v987 = vand.u32 %v68, 4294901760
    %988 = vmatpush1.msra.mxu0 %v987
    %989 = vmatprep.subr.mxu0 0.0
    %v990 = vand.u32 %v69, 4294901760
    %991 = vmatpush1.msra.mxu0 %v990
    %992 = vmatprep.subr.mxu0 0.0
    %v993 = vand.u32 %v70, 4294901760
    %994 = vmatpush1.msra.mxu0 %v993
    %995 = vmatprep.subr.mxu0 0.0
    %v996 = vand.u32 %v71, 4294901760
    %997 = vmatpush1.msra.mxu0 %v996
    %998 = vmatprep.subr.mxu0 0.0
    %v999 = vand.u32 %v72, 4294901760
    %1000 = vmatpush1.msra.mxu0 %v999
    %1001 = vmatprep.subr.mxu0 0.0
    %v1002 = vand.u32 %v73, 4294901760
    %1003 = vmatpush1.msra.mxu0 %v1002
    %1004 = vmatprep.subr.mxu0 0.0
    %v1005 = vand.u32 %v74, 4294901760
    %1006 = vmatpush1.msra.mxu0 %v1005
    %1007 = vmatprep.subr.mxu0 0.0
    %v1008 = vand.u32 %v75, 4294901760
    %1009 = vmatpush1.msra.mxu0 %v1008
    %1010 = vmatprep.subr.mxu0 0.0
    %v1011 = vand.u32 %v76, 4294901760
    %1012 = vmatpush1.msra.mxu0 %v1011
    %1013 = vmatprep.subr.mxu0 0.0
    %v1014 = vand.u32 %v77, 4294901760
    %1015 = vmatpush1.msra.mxu0 %v1014
    %1016 = vmatprep.subr.mxu0 0.0
    %1017 = vmatpush1.msra.mxu0 0.0
    %1018 = vmatprep.subr.mxu0 0.0
    %1019 = vmatpush1.msra.mxu0 0.0
    %1020 = vmatprep.subr.mxu0 0.0
    %1021 = vmatpush1.msra.mxu0 0.0
    %1022 = vmatprep.subr.mxu0 0.0
    %1023 = vmatpush1.msra.mxu0 0.0
    %1024 = vmatprep.subr.mxu0 0.0
    %1025 = vmatpush1.msra.mxu0 0.0
    %1026 = vmatprep.subr.mxu0 0.0
    %1027 = vmatpush1.msra.mxu0 0.0
    %1028 = vmatprep.subr.mxu0 0.0
    %1029 = vmatpush1.msra.mxu0 0.0
    %1030 = vmatprep.subr.mxu0 0.0
    %1031 = vmatpush1.msra.mxu0 0.0
    %1032 = vmatprep.subr.mxu0 0.0
    %1033 = vmatpush1.msra.mxu0 0.0
    %1034 = vmatprep.subr.mxu0 0.0
    %1035 = vmatpush1.msra.mxu0 0.0
    %1036 = vmatprep.subr.mxu0 0.0
    %1037 = vmatpush1.msra.mxu0 0.0
    %1038 = vmatprep.subr.mxu0 0.0
    %1039 = vmatpush1.msra.mxu0 0.0
    %1040 = vmatprep.subr.mxu0 0.0
    %1041 = vmatpush1.msra.mxu0 0.0
    %1042 = vmatprep.subr.mxu0 0.0
    %1043 = vmatpush1.msra.mxu0 0.0
    %1044 = vmatprep.subr.mxu0 0.0
    %1045 = vmatpush1.msra.mxu0 0.0
    %1046 = vmatprep.subr.mxu0 0.0
    %1047 = vmatpush1.msra.mxu0 0.0
    %1048 = vmatprep.mubr.f32.mxu0 0.0
    %v1049 = vand.u32 %v617, 4294901760
    %v1050 = vsub.f32 %v617, %v1049
    %v1051 = vand.u32 %v1050, 4294901760
    %1052 = vmatmul.mubr.f32.gmra.mrb[0].mxu0 %v1051
    %v1053 = vpop.f32.mrb[0].mxu0
    %v1054 = vadd.f32 %v965, %v1053
    %v1055 = vpop.f32.mrb[0].mxu0
    %1056 = vdwg.mxu0
    %1057 = vmatprep.subr.mxu0 0.0
    %v1058 = vand.u32 %v62, 4294901760
    %v1059 = vsub.f32 %v62, %v1058
    %v1060 = vand.u32 %v1059, 4294901760
    %1061 = vmatpush1.msra.mxu0 %v1060
    %1062 = vmatprep.subr.mxu0 0.0
    %v1063 = vand.u32 %v63, 4294901760
    %v1064 = vsub.f32 %v63, %v1063
    %v1065 = vand.u32 %v1064, 4294901760
    %1066 = vmatpush1.msra.mxu0 %v1065
    %1067 = vmatprep.subr.mxu0 0.0
    %v1068 = vand.u32 %v64, 4294901760
    %v1069 = vsub.f32 %v64, %v1068
    %v1070 = vand.u32 %v1069, 4294901760
    %1071 = vmatpush1.msra.mxu0 %v1070
    %1072 = vmatprep.subr.mxu0 0.0
    %v1073 = vand.u32 %v65, 4294901760
    %v1074 = vsub.f32 %v65, %v1073
    %v1075 = vand.u32 %v1074, 4294901760
    %1076 = vmatpush1.msra.mxu0 %v1075
    %1077 = vmatprep.subr.mxu0 0.0
    %v1078 = vand.u32 %v66, 4294901760
    %v1079 = vsub.f32 %v66, %v1078
    %v1080 = vand.u32 %v1079, 4294901760
    %1081 = vmatpush1.msra.mxu0 %v1080
    %1082 = vmatprep.subr.mxu0 0.0
    %v1083 = vand.u32 %v67, 4294901760
    %v1084 = vsub.f32 %v67, %v1083
    %v1085 = vand.u32 %v1084, 4294901760
    %1086 = vmatpush1.msra.mxu0 %v1085
    %1087 = vmatprep.subr.mxu0 0.0
    %v1088 = vand.u32 %v68, 4294901760
    %v1089 = vsub.f32 %v68, %v1088
    %v1090 = vand.u32 %v1089, 4294901760
    %1091 = vmatpush1.msra.mxu0 %v1090
    %1092 = vmatprep.subr.mxu0 0.0
    %v1093 = vand.u32 %v69, 4294901760
    %v1094 = vsub.f32 %v69, %v1093
    %v1095 = vand.u32 %v1094, 4294901760
    %1096 = vmatpush1.msra.mxu0 %v1095
    %1097 = vmatprep.subr.mxu0 0.0
    %v1098 = vand.u32 %v70, 4294901760
    %v1099 = vsub.f32 %v70, %v1098
    %v1100 = vand.u32 %v1099, 4294901760
    %1101 = vmatpush1.msra.mxu0 %v1100
    %1102 = vmatprep.subr.mxu0 0.0
    %v1103 = vand.u32 %v71, 4294901760
    %v1104 = vsub.f32 %v71, %v1103
    %v1105 = vand.u32 %v1104, 4294901760
    %1106 = vmatpush1.msra.mxu0 %v1105
    %1107 = vmatprep.subr.mxu0 0.0
    %v1108 = vand.u32 %v72, 4294901760
    %v1109 = vsub.f32 %v72, %v1108
    %v1110 = vand.u32 %v1109, 4294901760
    %1111 = vmatpush1.msra.mxu0 %v1110
    %1112 = vmatprep.subr.mxu0 0.0
    %v1113 = vand.u32 %v73, 4294901760
    %v1114 = vsub.f32 %v73, %v1113
    %v1115 = vand.u32 %v1114, 4294901760
    %1116 = vmatpush1.msra.mxu0 %v1115
    %1117 = vmatprep.subr.mxu0 0.0
    %v1118 = vand.u32 %v74, 4294901760
    %v1119 = vsub.f32 %v74, %v1118
    %v1120 = vand.u32 %v1119, 4294901760
    %1121 = vmatpush1.msra.mxu0 %v1120
    %1122 = vmatprep.subr.mxu0 0.0
    %v1123 = vand.u32 %v75, 4294901760
    %v1124 = vsub.f32 %v75, %v1123
    %v1125 = vand.u32 %v1124, 4294901760
    %1126 = vmatpush1.msra.mxu0 %v1125
    %1127 = vmatprep.subr.mxu0 0.0
    %v1128 = vand.u32 %v76, 4294901760
    %v1129 = vsub.f32 %v76, %v1128
    %v1130 = vand.u32 %v1129, 4294901760
    %1131 = vmatpush1.msra.mxu0 %v1130
    %1132 = vmatprep.subr.mxu0 0.0
    %v1133 = vand.u32 %v77, 4294901760
    %v1134 = vsub.f32 %v77, %v1133
    %v1135 = vand.u32 %v1134, 4294901760
    %1136 = vmatpush1.msra.mxu0 %v1135
    %1137 = vmatprep.subr.mxu0 0.0
    %1138 = vmatpush1.msra.mxu0 0.0
    %1139 = vmatprep.subr.mxu0 0.0
    %1140 = vmatpush1.msra.mxu0 0.0
    %1141 = vmatprep.subr.mxu0 0.0
    %1142 = vmatpush1.msra.mxu0 0.0
    %1143 = vmatprep.subr.mxu0 0.0
    %1144 = vmatpush1.msra.mxu0 0.0
    %1145 = vmatprep.subr.mxu0 0.0
    %1146 = vmatpush1.msra.mxu0 0.0
    %1147 = vmatprep.subr.mxu0 0.0
    %1148 = vmatpush1.msra.mxu0 0.0
    %1149 = vmatprep.subr.mxu0 0.0
    %1150 = vmatpush1.msra.mxu0 0.0
    %1151 = vmatprep.subr.mxu0 0.0
    %1152 = vmatpush1.msra.mxu0 0.0
    %1153 = vmatprep.subr.mxu0 0.0
    %1154 = vmatpush1.msra.mxu0 0.0
    %1155 = vmatprep.subr.mxu0 0.0
    %1156 = vmatpush1.msra.mxu0 0.0
    %1157 = vmatprep.subr.mxu0 0.0
    %1158 = vmatpush1.msra.mxu0 0.0
    %1159 = vmatprep.subr.mxu0 0.0
    %1160 = vmatpush1.msra.mxu0 0.0
    %1161 = vmatprep.subr.mxu0 0.0
    %1162 = vmatpush1.msra.mxu0 0.0
    %1163 = vmatprep.subr.mxu0 0.0
    %1164 = vmatpush1.msra.mxu0 0.0
    %1165 = vmatprep.subr.mxu0 0.0
    %1166 = vmatpush1.msra.mxu0 0.0
    %1167 = vmatprep.subr.mxu0 0.0
    %1168 = vmatpush1.msra.mxu0 0.0
    %1169 = vmatprep.mubr.f32.mxu0 0.0
    %v1170 = vand.u32 %v617, 4294901760
    %1171 = vmatmul.mubr.f32.gmra.mrb[0].mxu0 %v1170
    %v1172 = vpop.f32.mrb[0].mxu0
    %v1173 = vadd.f32 %v1054, %v1172
    %v1174 = vpop.f32.mrb[0].mxu0
    %1175 = vdwg.mxu0
    %1176 = vmatprep.subr.mxu0 0.0
    %v1177 = vand.u32 %v62, 4294901760
    %1178 = vmatpush1.msra.mxu0 %v1177
    %1179 = vmatprep.subr.mxu0 0.0
    %v1180 = vand.u32 %v63, 4294901760
    %1181 = vmatpush1.msra.mxu0 %v1180
    %1182 = vmatprep.subr.mxu0 0.0
    %v1183 = vand.u32 %v64, 4294901760
    %1184 = vmatpush1.msra.mxu0 %v1183
    %1185 = vmatprep.subr.mxu0 0.0
    %v1186 = vand.u32 %v65, 4294901760
    %1187 = vmatpush1.msra.mxu0 %v1186
    %1188 = vmatprep.subr.mxu0 0.0
    %v1189 = vand.u32 %v66, 4294901760
    %1190 = vmatpush1.msra.mxu0 %v1189
    %1191 = vmatprep.subr.mxu0 0.0
    %v1192 = vand.u32 %v67, 4294901760
    %1193 = vmatpush1.msra.mxu0 %v1192
    %1194 = vmatprep.subr.mxu0 0.0
    %v1195 = vand.u32 %v68, 4294901760
    %1196 = vmatpush1.msra.mxu0 %v1195
    %1197 = vmatprep.subr.mxu0 0.0
    %v1198 = vand.u32 %v69, 4294901760
    %1199 = vmatpush1.msra.mxu0 %v1198
    %1200 = vmatprep.subr.mxu0 0.0
    %v1201 = vand.u32 %v70, 4294901760
    %1202 = vmatpush1.msra.mxu0 %v1201
    %1203 = vmatprep.subr.mxu0 0.0
    %v1204 = vand.u32 %v71, 4294901760
    %1205 = vmatpush1.msra.mxu0 %v1204
    %1206 = vmatprep.subr.mxu0 0.0
    %v1207 = vand.u32 %v72, 4294901760
    %1208 = vmatpush1.msra.mxu0 %v1207
    %1209 = vmatprep.subr.mxu0 0.0
    %v1210 = vand.u32 %v73, 4294901760
    %1211 = vmatpush1.msra.mxu0 %v1210
    %1212 = vmatprep.subr.mxu0 0.0
    %v1213 = vand.u32 %v74, 4294901760
    %1214 = vmatpush1.msra.mxu0 %v1213
    %1215 = vmatprep.subr.mxu0 0.0
    %v1216 = vand.u32 %v75, 4294901760
    %1217 = vmatpush1.msra.mxu0 %v1216
    %1218 = vmatprep.subr.mxu0 0.0
    %v1219 = vand.u32 %v76, 4294901760
    %1220 = vmatpush1.msra.mxu0 %v1219
    %1221 = vmatprep.subr.mxu0 0.0
    %v1222 = vand.u32 %v77, 4294901760
    %1223 = vmatpush1.msra.mxu0 %v1222
    %1224 = vmatprep.subr.mxu0 0.0
    %1225 = vmatpush1.msra.mxu0 0.0
    %1226 = vmatprep.subr.mxu0 0.0
    %1227 = vmatpush1.msra.mxu0 0.0
    %1228 = vmatprep.subr.mxu0 0.0
    %1229 = vmatpush1.msra.mxu0 0.0
    %1230 = vmatprep.subr.mxu0 0.0
    %1231 = vmatpush1.msra.mxu0 0.0
    %1232 = vmatprep.subr.mxu0 0.0
    %1233 = vmatpush1.msra.mxu0 0.0
    %1234 = vmatprep.subr.mxu0 0.0
    %1235 = vmatpush1.msra.mxu0 0.0
    %1236 = vmatprep.subr.mxu0 0.0
    %1237 = vmatpush1.msra.mxu0 0.0
    %1238 = vmatprep.subr.mxu0 0.0
    %1239 = vmatpush1.msra.mxu0 0.0
    %1240 = vmatprep.subr.mxu0 0.0
    %1241 = vmatpush1.msra.mxu0 0.0
    %1242 = vmatprep.subr.mxu0 0.0
    %1243 = vmatpush1.msra.mxu0 0.0
    %1244 = vmatprep.subr.mxu0 0.0
    %1245 = vmatpush1.msra.mxu0 0.0
    %1246 = vmatprep.subr.mxu0 0.0
    %1247 = vmatpush1.msra.mxu0 0.0
    %1248 = vmatprep.subr.mxu0 0.0
    %1249 = vmatpush1.msra.mxu0 0.0
    %1250 = vmatprep.subr.mxu0 0.0
    %1251 = vmatpush1.msra.mxu0 0.0
    %1252 = vmatprep.subr.mxu0 0.0
    %1253 = vmatpush1.msra.mxu0 0.0
    %1254 = vmatprep.subr.mxu0 0.0
    %1255 = vmatpush1.msra.mxu0 0.0
    %1256 = vmatprep.mubr.f32.mxu0 0.0
    %v1257 = vand.u32 %v617, 4294901760
    %1258 = vmatmul.mubr.f32.gmra.mrb[0].mxu0 %v1257
    %v1259 = vpop.f32.mrb[0].mxu0
    %v1260 = vadd.f32 %v1173, %v1259
    %v1261 = vpop.f32.mrb[0].mxu0
    %1262 = vdwg.mxu0
    %v1263 = vrot.slane %v1260, 4
    %v1264 = vadd.f32 %v1260, %v1263
    %v1265 = vrot.slane %v1264, 2
    %v1266 = vadd.f32 %v1264, %v1265
    %v1267 = vrot.slane %v1266, 1
    %v1268 = vadd.f32 %v1266, %v1267
    %v1269 = vmul.f32 %v1268, 0.125
    %v1270 = vsub.f32 %v1260, %v1269
    %v1271 = vmul.f32 %v1270, %v1270
    %v1272 = vrot.slane %v1271, 4
    %v1273 = vadd.f32 %v1271, %v1272
    %v1274 = vrot.slane %v1273, 2
    %v1275 = vadd.f32 %v1273, %v1274
    %v1276 = vrot.slane %v1275, 1
    %v1277 = vadd.f32 %v1275, %v1276
    %v1278 = vmul.f32 %v1277, 0.125
    %v1279 = vadd.f32 %v1278, 1e-05
    %v1280 = vrsqrt.pop %v1279
    %v1281 = vmul.f32 %v94, %v1280
    %v1282 = vlaneseq
    %v1283 = vshrl.u32 %v1282, 7
    %v1284 = vsub.s32 4, %v1283
    %v1285 = vrot.slane %v1281, %v1284
    %v1286 = vmul.f32 %v1270, %v1285
    %v1287 = vlaneseq
    %v1288 = vshrl.u32 %v1287, 7
    %v1289 = vsub.s32 5, %v1288
    %v1290 = vrot.slane %v94, %v1289
    %v1291 = vadd.f32 %v1286, %v1290
    %v1292 = vmax.f32 %v1291, 0.0
    %v1293 = vlaneseq
    %v1294 = vshrl.u32 %v1293, 7
    %v1295 = vsub.s32 6, %v1294
    %v1296 = vrot.slane %v94, %v1295
    %1297 = vmatprep.subr.mxu0 0.0
    %v1298 = vand.u32 %v78, 4294901760
    %1299 = vmatpush1.msra.mxu0 %v1298
    %1300 = vmatprep.subr.mxu0 0.0
    %v1301 = vand.u32 %v79, 4294901760
    %1302 = vmatpush1.msra.mxu0 %v1301
    %1303 = vmatprep.subr.mxu0 0.0
    %v1304 = vand.u32 %v80, 4294901760
    %1305 = vmatpush1.msra.mxu0 %v1304
    %1306 = vmatprep.subr.mxu0 0.0
    %v1307 = vand.u32 %v81, 4294901760
    %1308 = vmatpush1.msra.mxu0 %v1307
    %1309 = vmatprep.subr.mxu0 0.0
    %v1310 = vand.u32 %v82, 4294901760
    %1311 = vmatpush1.msra.mxu0 %v1310
    %1312 = vmatprep.subr.mxu0 0.0
    %v1313 = vand.u32 %v83, 4294901760
    %1314 = vmatpush1.msra.mxu0 %v1313
    %1315 = vmatprep.subr.mxu0 0.0
    %v1316 = vand.u32 %v84, 4294901760
    %1317 = vmatpush1.msra.mxu0 %v1316
    %1318 = vmatprep.subr.mxu0 0.0
    %v1319 = vand.u32 %v85, 4294901760
    %1320 = vmatpush1.msra.mxu0 %v1319
    %1321 = vmatprep.subr.mxu0 0.0
    %v1322 = vand.u32 %v86, 4294901760
    %1323 = vmatpush1.msra.mxu0 %v1322
    %1324 = vmatprep.subr.mxu0 0.0
    %v1325 = vand.u32 %v87, 4294901760
    %1326 = vmatpush1.msra.mxu0 %v1325
    %1327 = vmatprep.subr.mxu0 0.0
    %v1328 = vand.u32 %v88, 4294901760
    %1329 = vmatpush1.msra.mxu0 %v1328
    %1330 = vmatprep.subr.mxu0 0.0
    %v1331 = vand.u32 %v89, 4294901760
    %1332 = vmatpush1.msra.mxu0 %v1331
    %1333 = vmatprep.subr.mxu0 0.0
    %v1334 = vand.u32 %v90, 4294901760
    %1335 = vmatpush1.msra.mxu0 %v1334
    %1336 = vmatprep.subr.mxu0 0.0
    %v1337 = vand.u32 %v91, 4294901760
    %1338 = vmatpush1.msra.mxu0 %v1337
    %1339 = vmatprep.subr.mxu0 0.0
    %v1340 = vand.u32 %v92, 4294901760
    %1341 = vmatpush1.msra.mxu0 %v1340
    %1342 = vmatprep.subr.mxu0 0.0
    %v1343 = vand.u32 %v93, 4294901760
    %1344 = vmatpush1.msra.mxu0 %v1343
    %1345 = vmatprep.subr.mxu0 0.0
    %1346 = vmatpush1.msra.mxu0 0.0
    %1347 = vmatprep.subr.mxu0 0.0
    %1348 = vmatpush1.msra.mxu0 0.0
    %1349 = vmatprep.subr.mxu0 0.0
    %1350 = vmatpush1.msra.mxu0 0.0
    %1351 = vmatprep.subr.mxu0 0.0
    %1352 = vmatpush1.msra.mxu0 0.0
    %1353 = vmatprep.subr.mxu0 0.0
    %1354 = vmatpush1.msra.mxu0 0.0
    %1355 = vmatprep.subr.mxu0 0.0
    %1356 = vmatpush1.msra.mxu0 0.0
    %1357 = vmatprep.subr.mxu0 0.0
    %1358 = vmatpush1.msra.mxu0 0.0
    %1359 = vmatprep.subr.mxu0 0.0
    %1360 = vmatpush1.msra.mxu0 0.0
    %1361 = vmatprep.subr.mxu0 0.0
    %1362 = vmatpush1.msra.mxu0 0.0
    %1363 = vmatprep.subr.mxu0 0.0
    %1364 = vmatpush1.msra.mxu0 0.0
    %1365 = vmatprep.subr.mxu0 0.0
    %1366 = vmatpush1.msra.mxu0 0.0
    %1367 = vmatprep.subr.mxu0 0.0
    %1368 = vmatpush1.msra.mxu0 0.0
    %1369 = vmatprep.subr.mxu0 0.0
    %1370 = vmatpush1.msra.mxu0 0.0
    %1371 = vmatprep.subr.mxu0 0.0
    %1372 = vmatpush1.msra.mxu0 0.0
    %1373 = vmatprep.subr.mxu0 0.0
    %1374 = vmatpush1.msra.mxu0 0.0
    %1375 = vmatprep.subr.mxu0 0.0
    %1376 = vmatpush1.msra.mxu0 0.0
    %1377 = vmatprep.mubr.f32.mxu0 0.0
    %v1378 = vand.u32 %v1292, 4294901760
    %v1379 = vsub.f32 %v1292, %v1378
    %v1380 = vand.u32 %v1379, 4294901760
    %v1381 = vsub.f32 %v1379, %v1380
    %v1382 = vand.u32 %v1381, 4294901760
    %1383 = vmatmul.mubr.f32.gmra.mrb[0].mxu0 %v1382
    %v1384 = vpop.f32.mrb[0].mxu0
    %v1385 = vadd.f32 %v1296, %v1384
    %v1386 = vpop.f32.mrb[0].mxu0
    %1387 = vdwg.mxu0
    %1388 = vmatprep.subr.mxu0 0.0
    %v1389 = vand.u32 %v78, 4294901760
    %v1390 = vsub.f32 %v78, %v1389
    %v1391 = vand.u32 %v1390, 4294901760
    %v1392 = vsub.f32 %v1390, %v1391
    %v1393 = vand.u32 %v1392, 4294901760
    %1394 = vmatpush1.msra.mxu0 %v1393
    %1395 = vmatprep.subr.mxu0 0.0
    %v1396 = vand.u32 %v79, 4294901760
    %v1397 = vsub.f32 %v79, %v1396
    %v1398 = vand.u32 %v1397, 4294901760
    %v1399 = vsub.f32 %v1397, %v1398
    %v1400 = vand.u32 %v1399, 4294901760
    %1401 = vmatpush1.msra.mxu0 %v1400
    %1402 = vmatprep.subr.mxu0 0.0
    %v1403 = vand.u32 %v80, 4294901760
    %v1404 = vsub.f32 %v80, %v1403
    %v1405 = vand.u32 %v1404, 4294901760
    %v1406 = vsub.f32 %v1404, %v1405
    %v1407 = vand.u32 %v1406, 4294901760
    %1408 = vmatpush1.msra.mxu0 %v1407
    %1409 = vmatprep.subr.mxu0 0.0
    %v1410 = vand.u32 %v81, 4294901760
    %v1411 = vsub.f32 %v81, %v1410
    %v1412 = vand.u32 %v1411, 4294901760
    %v1413 = vsub.f32 %v1411, %v1412
    %v1414 = vand.u32 %v1413, 4294901760
    %1415 = vmatpush1.msra.mxu0 %v1414
    %1416 = vmatprep.subr.mxu0 0.0
    %v1417 = vand.u32 %v82, 4294901760
    %v1418 = vsub.f32 %v82, %v1417
    %v1419 = vand.u32 %v1418, 4294901760
    %v1420 = vsub.f32 %v1418, %v1419
    %v1421 = vand.u32 %v1420, 4294901760
    %1422 = vmatpush1.msra.mxu0 %v1421
    %1423 = vmatprep.subr.mxu0 0.0
    %v1424 = vand.u32 %v83, 4294901760
    %v1425 = vsub.f32 %v83, %v1424
    %v1426 = vand.u32 %v1425, 4294901760
    %v1427 = vsub.f32 %v1425, %v1426
    %v1428 = vand.u32 %v1427, 4294901760
    %1429 = vmatpush1.msra.mxu0 %v1428
    %1430 = vmatprep.subr.mxu0 0.0
    %v1431 = vand.u32 %v84, 4294901760
    %v1432 = vsub.f32 %v84, %v1431
    %v1433 = vand.u32 %v1432, 4294901760
    %v1434 = vsub.f32 %v1432, %v1433
    %v1435 = vand.u32 %v1434, 4294901760
    %1436 = vmatpush1.msra.mxu0 %v1435
    %1437 = vmatprep.subr.mxu0 0.0
    %v1438 = vand.u32 %v85, 4294901760
    %v1439 = vsub.f32 %v85, %v1438
    %v1440 = vand.u32 %v1439, 4294901760
    %v1441 = vsub.f32 %v1439, %v1440
    %v1442 = vand.u32 %v1441, 4294901760
    %1443 = vmatpush1.msra.mxu0 %v1442
    %1444 = vmatprep.subr.mxu0 0.0
    %v1445 = vand.u32 %v86, 4294901760
    %v1446 = vsub.f32 %v86, %v1445
    %v1447 = vand.u32 %v1446, 4294901760
    %v1448 = vsub.f32 %v1446, %v1447
    %v1449 = vand.u32 %v1448, 4294901760
    %1450 = vmatpush1.msra.mxu0 %v1449
    %1451 = vmatprep.subr.mxu0 0.0
    %v1452 = vand.u32 %v87, 4294901760
    %v1453 = vsub.f32 %v87, %v1452
    %v1454 = vand.u32 %v1453, 4294901760
    %v1455 = vsub.f32 %v1453, %v1454
    %v1456 = vand.u32 %v1455, 4294901760
    %1457 = vmatpush1.msra.mxu0 %v1456
    %1458 = vmatprep.subr.mxu0 0.0
    %v1459 = vand.u32 %v88, 4294901760
    %v1460 = vsub.f32 %v88, %v1459
    %v1461 = vand.u32 %v1460, 4294901760
    %v1462 = vsub.f32 %v1460, %v1461
    %v1463 = vand.u32 %v1462, 4294901760
    %1464 = vmatpush1.msra.mxu0 %v1463
    %1465 = vmatprep.subr.mxu0 0.0
    %v1466 = vand.u32 %v89, 4294901760
    %v1467 = vsub.f32 %v89, %v1466
    %v1468 = vand.u32 %v1467, 4294901760
    %v1469 = vsub.f32 %v1467, %v1468
    %v1470 = vand.u32 %v1469, 4294901760
    %1471 = vmatpush1.msra.mxu0 %v1470
    %1472 = vmatprep.subr.mxu0 0.0
    %v1473 = vand.u32 %v90, 4294901760
    %v1474 = vsub.f32 %v90, %v1473
    %v1475 = vand.u32 %v1474, 4294901760
    %v1476 = vsub.f32 %v1474, %v1475
    %v1477 = vand.u32 %v1476, 4294901760
    %1478 = vmatpush1.msra.mxu0 %v1477
    %1479 = vmatprep.subr.mxu0 0.0
    %v1480 = vand.u32 %v91, 4294901760
    %v1481 = vsub.f32 %v91, %v1480
    %v1482 = vand.u32 %v1481, 4294901760
    %v1483 = vsub.f32 %v1481, %v1482
    %v1484 = vand.u32 %v1483, 4294901760
    %1485 = vmatpush1.msra.mxu0 %v1484
    %1486 = vmatprep.subr.mxu0 0.0
    %v1487 = vand.u32 %v92, 4294901760
    %v1488 = vsub.f32 %v92, %v1487
    %v1489 = vand.u32 %v1488, 4294901760
    %v1490 = vsub.f32 %v1488, %v1489
    %v1491 = vand.u32 %v1490, 4294901760
    %1492 = vmatpush1.msra.mxu0 %v1491
    %1493 = vmatprep.subr.mxu0 0.0
    %v1494 = vand.u32 %v93, 4294901760
    %v1495 = vsub.f32 %v93, %v1494
    %v1496 = vand.u32 %v1495, 4294901760
    %v1497 = vsub.f32 %v1495, %v1496
    %v1498 = vand.u32 %v1497, 4294901760
    %1499 = vmatpush1.msra.mxu0 %v1498
    %1500 = vmatprep.subr.mxu0 0.0
    %1501 = vmatpush1.msra.mxu0 0.0
    %1502 = vmatprep.subr.mxu0 0.0
    %1503 = vmatpush1.msra.mxu0 0.0
    %1504 = vmatprep.subr.mxu0 0.0
    %1505 = vmatpush1.msra.mxu0 0.0
    %1506 = vmatprep.subr.mxu0 0.0
    %1507 = vmatpush1.msra.mxu0 0.0
    %1508 = vmatprep.subr.mxu0 0.0
    %1509 = vmatpush1.msra.mxu0 0.0
    %1510 = vmatprep.subr.mxu0 0.0
    %1511 = vmatpush1.msra.mxu0 0.0
    %1512 = vmatprep.subr.mxu0 0.0
    %1513 = vmatpush1.msra.mxu0 0.0
    %1514 = vmatprep.subr.mxu0 0.0
    %1515 = vmatpush1.msra.mxu0 0.0
    %1516 = vmatprep.subr.mxu0 0.0
    %1517 = vmatpush1.msra.mxu0 0.0
    %1518 = vmatprep.subr.mxu0 0.0
    %1519 = vmatpush1.msra.mxu0 0.0
    %1520 = vmatprep.subr.mxu0 0.0
    %1521 = vmatpush1.msra.mxu0 0.0
    %1522 = vmatprep.subr.mxu0 0.0
    %1523 = vmatpush1.msra.mxu0 0.0
    %1524 = vmatprep.subr.mxu0 0.0
    %1525 = vmatpush1.msra.mxu0 0.0
    %1526 = vmatprep.subr.mxu0 0.0
    %1527 = vmatpush1.msra.mxu0 0.0
    %1528 = vmatprep.subr.mxu0 0.0
    %1529 = vmatpush1.msra.mxu0 0.0
    %1530 = vmatprep.subr.mxu0 0.0
    %1531 = vmatpush1.msra.mxu0 0.0
    %1532 = vmatprep.mubr.f32.mxu0 0.0
    %v1533 = vand.u32 %v1292, 4294901760
    %1534 = vmatmul.mubr.f32.gmra.mrb[0].mxu0 %v1533
    %v1535 = vpop.f32.mrb[0].mxu0
    %v1536 = vadd.f32 %v1385, %v1535
    %v1537 = vpop.f32.mrb[0].mxu0
    %1538 = vdwg.mxu0
    %1539 = vmatprep.subr.mxu0 0.0
    %v1540 = vand.u32 %v78, 4294901760
    %v1541 = vsub.f32 %v78, %v1540
    %1542 = vmatpush1.msra.mxu0 %v1541
    %1543 = vmatprep.subr.mxu0 0.0
    %v1544 = vand.u32 %v79, 4294901760
    %v1545 = vsub.f32 %v79, %v1544
    %1546 = vmatpush1.msra.mxu0 %v1545
    %1547 = vmatprep.subr.mxu0 0.0
    %v1548 = vand.u32 %v80, 4294901760
    %v1549 = vsub.f32 %v80, %v1548
    %1550 = vmatpush1.msra.mxu0 %v1549
    %1551 = vmatprep.subr.mxu0 0.0
    %v1552 = vand.u32 %v81, 4294901760
    %v1553 = vsub.f32 %v81, %v1552
    %1554 = vmatpush1.msra.mxu0 %v1553
    %1555 = vmatprep.subr.mxu0 0.0
    %v1556 = vand.u32 %v82, 4294901760
    %v1557 = vsub.f32 %v82, %v1556
    %1558 = vmatpush1.msra.mxu0 %v1557
    %1559 = vmatprep.subr.mxu0 0.0
    %v1560 = vand.u32 %v83, 4294901760
    %v1561 = vsub.f32 %v83, %v1560
    %1562 = vmatpush1.msra.mxu0 %v1561
    %1563 = vmatprep.subr.mxu0 0.0
    %v1564 = vand.u32 %v84, 4294901760
    %v1565 = vsub.f32 %v84, %v1564
    %1566 = vmatpush1.msra.mxu0 %v1565
    %1567 = vmatprep.subr.mxu0 0.0
    %v1568 = vand.u32 %v85, 4294901760
    %v1569 = vsub.f32 %v85, %v1568
    %1570 = vmatpush1.msra.mxu0 %v1569
    %1571 = vmatprep.subr.mxu0 0.0
    %v1572 = vand.u32 %v86, 4294901760
    %v1573 = vsub.f32 %v86, %v1572
    %1574 = vmatpush1.msra.mxu0 %v1573
    %1575 = vmatprep.subr.mxu0 0.0
    %v1576 = vand.u32 %v87, 4294901760
    %v1577 = vsub.f32 %v87, %v1576
    %1578 = vmatpush1.msra.mxu0 %v1577
    %1579 = vmatprep.subr.mxu0 0.0
    %v1580 = vand.u32 %v88, 4294901760
    %v1581 = vsub.f32 %v88, %v1580
    %1582 = vmatpush1.msra.mxu0 %v1581
    %1583 = vmatprep.subr.mxu0 0.0
    %v1584 = vand.u32 %v89, 4294901760
    %v1585 = vsub.f32 %v89, %v1584
    %1586 = vmatpush1.msra.mxu0 %v1585
    %1587 = vmatprep.subr.mxu0 0.0
    %v1588 = vand.u32 %v90, 4294901760
    %v1589 = vsub.f32 %v90, %v1588
    %1590 = vmatpush1.msra.mxu0 %v1589
    %1591 = vmatprep.subr.mxu0 0.0
    %v1592 = vand.u32 %v91, 4294901760
    %v1593 = vsub.f32 %v91, %v1592
    %1594 = vmatpush1.msra.mxu0 %v1593
    %1595 = vmatprep.subr.mxu0 0.0
    %v1596 = vand.u32 %v92, 4294901760
    %v1597 = vsub.f32 %v92, %v1596
    %1598 = vmatpush1.msra.mxu0 %v1597
    %1599 = vmatprep.subr.mxu0 0.0
    %v1600 = vand.u32 %v93, 4294901760
    %v1601 = vsub.f32 %v93, %v1600
    %1602 = vmatpush1.msra.mxu0 %v1601
    %1603 = vmatprep.subr.mxu0 0.0
    %1604 = vmatpush1.msra.mxu0 0.0
    %1605 = vmatprep.subr.mxu0 0.0
    %1606 = vmatpush1.msra.mxu0 0.0
    %1607 = vmatprep.subr.mxu0 0.0
    %1608 = vmatpush1.msra.mxu0 0.0
    %1609 = vmatprep.subr.mxu0 0.0
    %1610 = vmatpush1.msra.mxu0 0.0
    %1611 = vmatprep.subr.mxu0 0.0
    %1612 = vmatpush1.msra.mxu0 0.0
    %1613 = vmatprep.subr.mxu0 0.0
    %1614 = vmatpush1.msra.mxu0 0.0
    %1615 = vmatprep.subr.mxu0 0.0
    %1616 = vmatpush1.msra.mxu0 0.0
    %1617 = vmatprep.subr.mxu0 0.0
    %1618 = vmatpush1.msra.mxu0 0.0
    %1619 = vmatprep.subr.mxu0 0.0
    %1620 = vmatpush1.msra.mxu0 0.0
    %1621 = vmatprep.subr.mxu0 0.0
    %1622 = vmatpush1.msra.mxu0 0.0
    %1623 = vmatprep.subr.mxu0 0.0
    %1624 = vmatpush1.msra.mxu0 0.0
    %1625 = vmatprep.subr.mxu0 0.0
    %1626 = vmatpush1.msra.mxu0 0.0
    %1627 = vmatprep.subr.mxu0 0.0
    %1628 = vmatpush1.msra.mxu0 0.0
    %1629 = vmatprep.subr.mxu0 0.0
    %1630 = vmatpush1.msra.mxu0 0.0
    %1631 = vmatprep.subr.mxu0 0.0
    %1632 = vmatpush1.msra.mxu0 0.0
    %1633 = vmatprep.subr.mxu0 0.0
    %1634 = vmatpush1.msra.mxu0 0.0
    %1635 = vmatprep.mubr.f32.mxu0 0.0
    %v1636 = vand.u32 %v1292, 4294901760
    %v1637 = vsub.f32 %v1292, %v1636
    %1638 = vmatmul.mubr.f32.gmra.mrb[0].mxu0 %v1637
    %v1639 = vpop.f32.mrb[0].mxu0
    %v1640 = vadd.f32 %v1536, %v1639
    %v1641 = vpop.f32.mrb[0].mxu0
    %1642 = vdwg.mxu0
    %1643 = vmatprep.subr.mxu0 0.0
    %v1644 = vand.u32 %v78, 4294901760
    %1645 = vmatpush1.msra.mxu0 %v1644
    %1646 = vmatprep.subr.mxu0 0.0
    %v1647 = vand.u32 %v79, 4294901760
    %1648 = vmatpush1.msra.mxu0 %v1647
    %1649 = vmatprep.subr.mxu0 0.0
    %v1650 = vand.u32 %v80, 4294901760
    %1651 = vmatpush1.msra.mxu0 %v1650
    %1652 = vmatprep.subr.mxu0 0.0
    %v1653 = vand.u32 %v81, 4294901760
    %1654 = vmatpush1.msra.mxu0 %v1653
    %1655 = vmatprep.subr.mxu0 0.0
    %v1656 = vand.u32 %v82, 4294901760
    %1657 = vmatpush1.msra.mxu0 %v1656
    %1658 = vmatprep.subr.mxu0 0.0
    %v1659 = vand.u32 %v83, 4294901760
    %1660 = vmatpush1.msra.mxu0 %v1659
    %1661 = vmatprep.subr.mxu0 0.0
    %v1662 = vand.u32 %v84, 4294901760
    %1663 = vmatpush1.msra.mxu0 %v1662
    %1664 = vmatprep.subr.mxu0 0.0
    %v1665 = vand.u32 %v85, 4294901760
    %1666 = vmatpush1.msra.mxu0 %v1665
    %1667 = vmatprep.subr.mxu0 0.0
    %v1668 = vand.u32 %v86, 4294901760
    %1669 = vmatpush1.msra.mxu0 %v1668
    %1670 = vmatprep.subr.mxu0 0.0
    %v1671 = vand.u32 %v87, 4294901760
    %1672 = vmatpush1.msra.mxu0 %v1671
    %1673 = vmatprep.subr.mxu0 0.0
    %v1674 = vand.u32 %v88, 4294901760
    %1675 = vmatpush1.msra.mxu0 %v1674
    %1676 = vmatprep.subr.mxu0 0.0
    %v1677 = vand.u32 %v89, 4294901760
    %1678 = vmatpush1.msra.mxu0 %v1677
    %1679 = vmatprep.subr.mxu0 0.0
    %v1680 = vand.u32 %v90, 4294901760
    %1681 = vmatpush1.msra.mxu0 %v1680
    %1682 = vmatprep.subr.mxu0 0.0
    %v1683 = vand.u32 %v91, 4294901760
    %1684 = vmatpush1.msra.mxu0 %v1683
    %1685 = vmatprep.subr.mxu0 0.0
    %v1686 = vand.u32 %v92, 4294901760
    %1687 = vmatpush1.msra.mxu0 %v1686
    %1688 = vmatprep.subr.mxu0 0.0
    %v1689 = vand.u32 %v93, 4294901760
    %1690 = vmatpush1.msra.mxu0 %v1689
    %1691 = vmatprep.subr.mxu0 0.0
    %1692 = vmatpush1.msra.mxu0 0.0
    %1693 = vmatprep.subr.mxu0 0.0
    %1694 = vmatpush1.msra.mxu0 0.0
    %1695 = vmatprep.subr.mxu0 0.0
    %1696 = vmatpush1.msra.mxu0 0.0
    %1697 = vmatprep.subr.mxu0 0.0
    %1698 = vmatpush1.msra.mxu0 0.0
    %1699 = vmatprep.subr.mxu0 0.0
    %1700 = vmatpush1.msra.mxu0 0.0
    %1701 = vmatprep.subr.mxu0 0.0
    %1702 = vmatpush1.msra.mxu0 0.0
    %1703 = vmatprep.subr.mxu0 0.0
    %1704 = vmatpush1.msra.mxu0 0.0
    %1705 = vmatprep.subr.mxu0 0.0
    %1706 = vmatpush1.msra.mxu0 0.0
    %1707 = vmatprep.subr.mxu0 0.0
    %1708 = vmatpush1.msra.mxu0 0.0
    %1709 = vmatprep.subr.mxu0 0.0
    %1710 = vmatpush1.msra.mxu0 0.0
    %1711 = vmatprep.subr.mxu0 0.0
    %1712 = vmatpush1.msra.mxu0 0.0
    %1713 = vmatprep.subr.mxu0 0.0
    %1714 = vmatpush1.msra.mxu0 0.0
    %1715 = vmatprep.subr.mxu0 0.0
    %1716 = vmatpush1.msra.mxu0 0.0
    %1717 = vmatprep.subr.mxu0 0.0
    %1718 = vmatpush1.msra.mxu0 0.0
    %1719 = vmatprep.subr.mxu0 0.0
    %1720 = vmatpush1.msra.mxu0 0.0
    %1721 = vmatprep.subr.mxu0 0.0
    %1722 = vmatpush1.msra.mxu0 0.0
    %1723 = vmatprep.mubr.f32.mxu0 0.0
    %v1724 = vand.u32 %v1292, 4294901760
    %v1725 = vsub.f32 %v1292, %v1724
    %v1726 = vand.u32 %v1725, 4294901760
    %1727 = vmatmul.mubr.f32.gmra.mrb[0].mxu0 %v1726
    %v1728 = vpop.f32.mrb[0].mxu0
    %v1729 = vadd.f32 %v1640, %v1728
    %v1730 = vpop.f32.mrb[0].mxu0
    %1731 = vdwg.mxu0
    %1732 = vmatprep.subr.mxu0 0.0
    %v1733 = vand.u32 %v78, 4294901760
    %v1734 = vsub.f32 %v78, %v1733
    %v1735 = vand.u32 %v1734, 4294901760
    %1736 = vmatpush1.msra.mxu0 %v1735
    %1737 = vmatprep.subr.mxu0 0.0
    %v1738 = vand.u32 %v79, 4294901760
    %v1739 = vsub.f32 %v79, %v1738
    %v1740 = vand.u32 %v1739, 4294901760
    %1741 = vmatpush1.msra.mxu0 %v1740
    %1742 = vmatprep.subr.mxu0 0.0
    %v1743 = vand.u32 %v80, 4294901760
    %v1744 = vsub.f32 %v80, %v1743
    %v1745 = vand.u32 %v1744, 4294901760
    %1746 = vmatpush1.msra.mxu0 %v1745
    %1747 = vmatprep.subr.mxu0 0.0
    %v1748 = vand.u32 %v81, 4294901760
    %v1749 = vsub.f32 %v81, %v1748
    %v1750 = vand.u32 %v1749, 4294901760
    %1751 = vmatpush1.msra.mxu0 %v1750
    %1752 = vmatprep.subr.mxu0 0.0
    %v1753 = vand.u32 %v82, 4294901760
    %v1754 = vsub.f32 %v82, %v1753
    %v1755 = vand.u32 %v1754, 4294901760
    %1756 = vmatpush1.msra.mxu0 %v1755
    %1757 = vmatprep.subr.mxu0 0.0
    %v1758 = vand.u32 %v83, 4294901760
    %v1759 = vsub.f32 %v83, %v1758
    %v1760 = vand.u32 %v1759, 4294901760
    %1761 = vmatpush1.msra.mxu0 %v1760
    %1762 = vmatprep.subr.mxu0 0.0
    %v1763 = vand.u32 %v84, 4294901760
    %v1764 = vsub.f32 %v84, %v1763
    %v1765 = vand.u32 %v1764, 4294901760
    %1766 = vmatpush1.msra.mxu0 %v1765
    %1767 = vmatprep.subr.mxu0 0.0
    %v1768 = vand.u32 %v85, 4294901760
    %v1769 = vsub.f32 %v85, %v1768
    %v1770 = vand.u32 %v1769, 4294901760
    %1771 = vmatpush1.msra.mxu0 %v1770
    %1772 = vmatprep.subr.mxu0 0.0
    %v1773 = vand.u32 %v86, 4294901760
    %v1774 = vsub.f32 %v86, %v1773
    %v1775 = vand.u32 %v1774, 4294901760
    %1776 = vmatpush1.msra.mxu0 %v1775
    %1777 = vmatprep.subr.mxu0 0.0
    %v1778 = vand.u32 %v87, 4294901760
    %v1779 = vsub.f32 %v87, %v1778
    %v1780 = vand.u32 %v1779, 4294901760
    %1781 = vmatpush1.msra.mxu0 %v1780
    %1782 = vmatprep.subr.mxu0 0.0
    %v1783 = vand.u32 %v88, 4294901760
    %v1784 = vsub.f32 %v88, %v1783
    %v1785 = vand.u32 %v1784, 4294901760
    %1786 = vmatpush1.msra.mxu0 %v1785
    %1787 = vmatprep.subr.mxu0 0.0
    %v1788 = vand.u32 %v89, 4294901760
    %v1789 = vsub.f32 %v89, %v1788
    %v1790 = vand.u32 %v1789, 4294901760
    %1791 = vmatpush1.msra.mxu0 %v1790
    %1792 = vmatprep.subr.mxu0 0.0
    %v1793 = vand.u32 %v90, 4294901760
    %v1794 = vsub.f32 %v90, %v1793
    %v1795 = vand.u32 %v1794, 4294901760
    %1796 = vmatpush1.msra.mxu0 %v1795
    %1797 = vmatprep.subr.mxu0 0.0
    %v1798 = vand.u32 %v91, 4294901760
    %v1799 = vsub.f32 %v91, %v1798
    %v1800 = vand.u32 %v1799, 4294901760
    %1801 = vmatpush1.msra.mxu0 %v1800
    %1802 = vmatprep.subr.mxu0 0.0
    %v1803 = vand.u32 %v92, 4294901760
    %v1804 = vsub.f32 %v92, %v1803
    %v1805 = vand.u32 %v1804, 4294901760
    %1806 = vmatpush1.msra.mxu0 %v1805
    %1807 = vmatprep.subr.mxu0 0.0
    %v1808 = vand.u32 %v93, 4294901760
    %v1809 = vsub.f32 %v93, %v1808
    %v1810 = vand.u32 %v1809, 4294901760
    %1811 = vmatpush1.msra.mxu0 %v1810
    %1812 = vmatprep.subr.mxu0 0.0
    %1813 = vmatpush1.msra.mxu0 0.0
    %1814 = vmatprep.subr.mxu0 0.0
    %1815 = vmatpush1.msra.mxu0 0.0
    %1816 = vmatprep.subr.mxu0 0.0
    %1817 = vmatpush1.msra.mxu0 0.0
    %1818 = vmatprep.subr.mxu0 0.0
    %1819 = vmatpush1.msra.mxu0 0.0
    %1820 = vmatprep.subr.mxu0 0.0
    %1821 = vmatpush1.msra.mxu0 0.0
    %1822 = vmatprep.subr.mxu0 0.0
    %1823 = vmatpush1.msra.mxu0 0.0
    %1824 = vmatprep.subr.mxu0 0.0
    %1825 = vmatpush1.msra.mxu0 0.0
    %1826 = vmatprep.subr.mxu0 0.0
    %1827 = vmatpush1.msra.mxu0 0.0
    %1828 = vmatprep.subr.mxu0 0.0
    %1829 = vmatpush1.msra.mxu0 0.0
    %1830 = vmatprep.subr.mxu0 0.0
    %1831 = vmatpush1.msra.mxu0 0.0
    %1832 = vmatprep.subr.mxu0 0.0
    %1833 = vmatpush1.msra.mxu0 0.0
    %1834 = vmatprep.subr.mxu0 0.0
    %1835 = vmatpush1.msra.mxu0 0.0
    %1836 = vmatprep.subr.mxu0 0.0
    %1837 = vmatpush1.msra.mxu0 0.0
    %1838 = vmatprep.subr.mxu0 0.0
    %1839 = vmatpush1.msra.mxu0 0.0
    %1840 = vmatprep.subr.mxu0 0.0
    %1841 = vmatpush1.msra.mxu0 0.0
    %1842 = vmatprep.subr.mxu0 0.0
    %1843 = vmatpush1.msra.mxu0 0.0
    %1844 = vmatprep.mubr.f32.mxu0 0.0
    %v1845 = vand.u32 %v1292, 4294901760
    %1846 = vmatmul.mubr.f32.gmra.mrb[0].mxu0 %v1845
    %v1847 = vpop.f32.mrb[0].mxu0
    %v1848 = vadd.f32 %v1729, %v1847
    %v1849 = vpop.f32.mrb[0].mxu0
    %1850 = vdwg.mxu0
    %1851 = vmatprep.subr.mxu0 0.0
    %v1852 = vand.u32 %v78, 4294901760
    %1853 = vmatpush1.msra.mxu0 %v1852
    %1854 = vmatprep.subr.mxu0 0.0
    %v1855 = vand.u32 %v79, 4294901760
    %1856 = vmatpush1.msra.mxu0 %v1855
    %1857 = vmatprep.subr.mxu0 0.0
    %v1858 = vand.u32 %v80, 4294901760
    %1859 = vmatpush1.msra.mxu0 %v1858
    %1860 = vmatprep.subr.mxu0 0.0
    %v1861 = vand.u32 %v81, 4294901760
    %1862 = vmatpush1.msra.mxu0 %v1861
    %1863 = vmatprep.subr.mxu0 0.0
    %v1864 = vand.u32 %v82, 4294901760
    %1865 = vmatpush1.msra.mxu0 %v1864
    %1866 = vmatprep.subr.mxu0 0.0
    %v1867 = vand.u32 %v83, 4294901760
    %1868 = vmatpush1.msra.mxu0 %v1867
    %1869 = vmatprep.subr.mxu0 0.0
    %v1870 = vand.u32 %v84, 4294901760
    %1871 = vmatpush1.msra.mxu0 %v1870
    %1872 = vmatprep.subr.mxu0 0.0
    %v1873 = vand.u32 %v85, 4294901760
    %1874 = vmatpush1.msra.mxu0 %v1873
    %1875 = vmatprep.subr.mxu0 0.0
    %v1876 = vand.u32 %v86, 4294901760
    %1877 = vmatpush1.msra.mxu0 %v1876
    %1878 = vmatprep.subr.mxu0 0.0
    %v1879 = vand.u32 %v87, 4294901760
    %1880 = vmatpush1.msra.mxu0 %v1879
    %1881 = vmatprep.subr.mxu0 0.0
    %v1882 = vand.u32 %v88, 4294901760
    %1883 = vmatpush1.msra.mxu0 %v1882
    %1884 = vmatprep.subr.mxu0 0.0
    %v1885 = vand.u32 %v89, 4294901760
    %1886 = vmatpush1.msra.mxu0 %v1885
    %1887 = vmatprep.subr.mxu0 0.0
    %v1888 = vand.u32 %v90, 4294901760
    %1889 = vmatpush1.msra.mxu0 %v1888
    %1890 = vmatprep.subr.mxu0 0.0
    %v1891 = vand.u32 %v91, 4294901760
    %1892 = vmatpush1.msra.mxu0 %v1891
    %1893 = vmatprep.subr.mxu0 0.0
    %v1894 = vand.u32 %v92, 4294901760
    %1895 = vmatpush1.msra.mxu0 %v1894
    %1896 = vmatprep.subr.mxu0 0.0
    %v1897 = vand.u32 %v93, 4294901760
    %1898 = vmatpush1.msra.mxu0 %v1897
    %1899 = vmatprep.subr.mxu0 0.0
    %1900 = vmatpush1.msra.mxu0 0.0
    %1901 = vmatprep.subr.mxu0 0.0
    %1902 = vmatpush1.msra.mxu0 0.0
    %1903 = vmatprep.subr.mxu0 0.0
    %1904 = vmatpush1.msra.mxu0 0.0
    %1905 = vmatprep.subr.mxu0 0.0
    %1906 = vmatpush1.msra.mxu0 0.0
    %1907 = vmatprep.subr.mxu0 0.0
    %1908 = vmatpush1.msra.mxu0 0.0
    %1909 = vmatprep.subr.mxu0 0.0
    %1910 = vmatpush1.msra.mxu0 0.0
    %1911 = vmatprep.subr.mxu0 0.0
    %1912 = vmatpush1.msra.mxu0 0.0
    %1913 = vmatprep.subr.mxu0 0.0
    %1914 = vmatpush1.msra.mxu0 0.0
    %1915 = vmatprep.subr.mxu0 0.0
    %1916 = vmatpush1.msra.mxu0 0.0
    %1917 = vmatprep.subr.mxu0 0.0
    %1918 = vmatpush1.msra.mxu0 0.0
    %1919 = vmatprep.subr.mxu0 0.0
    %1920 = vmatpush1.msra.mxu0 0.0
    %1921 = vmatprep.subr.mxu0 0.0
    %1922 = vmatpush1.msra.mxu0 0.0
    %1923 = vmatprep.subr.mxu0 0.0
    %1924 = vmatpush1.msra.mxu0 0.0
    %1925 = vmatprep.subr.mxu0 0.0
    %1926 = vmatpush1.msra.mxu0 0.0
    %1927 = vmatprep.subr.mxu0 0.0
    %1928 = vmatpush1.msra.mxu0 0.0
    %1929 = vmatprep.subr.mxu0 0.0
    %1930 = vmatpush1.msra.mxu0 0.0
    %1931 = vmatprep.mubr.f32.mxu0 0.0
    %v1932 = vand.u32 %v1292, 4294901760
    %1933 = vmatmul.mubr.f32.gmra.mrb[0].mxu0 %v1932
    %v1934 = vpop.f32.mrb[0].mxu0
    %v1935 = vadd.f32 %v1848, %v1934
    %v1936 = vpop.f32.mrb[0].mxu0
    %1937 = vdwg.mxu0
    %1938 = vst [vmem:[#allocation8] sm:$0xff] %v1935
    // Predicated region
    $region30: #{tpu_custom_call.1} parent=1 // pred_check
      _
    $region31: #{tpu_custom_call.1} parent=1 // pred_check_branch
      %1940 = sbr.rel (0) target = $region33
    $region32: #{tpu_custom_call.1} parent=1 // pred_region
      %s1942 = ssub.s32 128, 128
      %1943 = vsyncadd [#allocation4], %s1942
      %s1945 = sshll.u32 [#allocation8], 4
      %s1946 = int_to_ptr.vmem [resolvable:$true] %s1945
      %1948 = dma.vmem_to_hbm [thread:$0]  %s1946, 128, %s4, [#allocation4]
    $region33: #{tpu_custom_call.1} parent=1 // pred_fallthru
      _
    // Predicated region
    $region34: #{tpu_custom_call.1} parent=1 // pred_check
      _
    $region35: #{tpu_custom_call.1} parent=1 // pred_check_branch
      %1950 = sbr.rel (0) target = $region37
    $region36: #{tpu_custom_call.1} parent=1 // pred_region
      %1951 = dma.done [#allocation4], 128
    $region37: #{tpu_custom_call.1} parent=1 // pred_fallthru
      _
    %1952 = vsyncpa [#allocation3], 1
    %1953 = vsyncpa [#allocation6], 1
    %1954 = vsyncpa [#allocation4], 1

</llo_original>
